<compile_context>
chip_gen: v7x
topology: tpu7x:2x2x1
jax: 0.10.0
libtpu: 0.0.40
codegen_flags: <defaults>
</compile_context>

<pallas_src>
import functools

import jax
import jax.numpy as jnp
import numpy as np
from jax import lax
from jax.experimental import pallas as pl
from jax.experimental.pallas import tpu as pltpu


def _round_up(x, m):
    return ((x + m - 1) // m) * m


def _cdiv(a, b):
    return -(-a // b)


def _pad_amounts(kernel_size, causal):
    if kernel_size == 1:
        return 0, 0
    if causal:
        return kernel_size - 1, 0
    return (kernel_size - 1) // 2, kernel_size // 2


@functools.lru_cache(maxsize=1)
def _vmem_capacity_bytes():
    """Physical VMEM; conservative (v7x-sized) fallback if the query fails."""
    try:
        info = pltpu.get_tpu_info()
        cap = int(getattr(info, "vmem_capacity_bytes", 0) or 0)
        if cap > 0:
            return cap
    except Exception:
        pass
    return 64 * 1024 * 1024


def _make_ffn_kernel(K, tT, rows1, lead, L8, two_pl, two_pr, Wp, pad_l, wB,
                     activation, compute_dtype):
    """Fused FFN kernel: wB independent time windows per grid step.

    conv_1 / conv_2 are each K accumulated MXU matmuls (per-tap weights); the
    window (core + halo rows) is assembled once in a small VMEM scratch.
    """

    def body(i, xc_ref, xh_ref, m_ref, w1_ref, b1_ref, w2_ref, b2_ref,
             o_ref, xw_ref):
        # xc_ref: (wB, tT, Cin)        masked core input rows, bf16
        # xh_ref: (wB, H, Cin)         halo rows [left 2*pad_l | right 2*pad_r]
        # m_ref : (wB, rows1, 1)       mask over hidden rows [-pad_l, tT+pad_r)
        # w1_ref: (K, Cin, F) bf16     b1_ref: (1, F) f32
        # w2_ref: (K, F, Cout) bf16    b2_ref: (1, Cout) f32
        # o_ref : (wB, tT, Cout)
        # xw_ref: (wB, Wp, Cin)        window-assembly scratch (K > 1 only)

        # ---- conv_1: K accumulated MXU matmuls (f32 accumulation) ----
        if K == 1:
            h = jnp.dot(xc_ref[i], w1_ref[0],
                        preferred_element_type=jnp.float32)
        else:
            # Assemble the window.  The big core store is 8-aligned (row L8);
            # only the tiny halo stores are misaligned.
            if two_pl:
                xw_ref[i, lead:L8, :] = xh_ref[i, 0:two_pl, :]
            xw_ref[i, L8:L8 + tT, :] = xc_ref[i]
            if two_pr:
                xw_ref[i, L8 + tT:Wp, :] = xh_ref[i, two_pl:two_pl + two_pr, :]
            h = None
            for k in range(K):
                part = jnp.dot(xw_ref[i, lead + k:lead + k + rows1, :],
                               w1_ref[k], preferred_element_type=jnp.float32)
                h = part if h is None else h + part

        h = h + b1_ref[...]
        if activation == "gelu":
            # x * sigmoid(1.702 x) with exp + approx reciprocal (EUP slot).
            e = jnp.exp(-1.702 * h)
            h = h * pl.reciprocal(1.0 + e, approx=True)
        else:
            h = jnp.maximum(h, 0.0)
        # dropout: identity (p_dropout = 0.0 / inference)

        # ---- re-mask + conv_2: K accumulated MXU matmuls ----
        m = m_ref[i]                                    # (rows1, 1) f32
        hm = (h * m).astype(compute_dtype)              # (rows1, F) bf16
        y = None
        for k in range(K):
            part = jnp.dot(hm[k:k + tT, :], w2_ref[k],
                           preferred_element_type=jnp.float32)
            y = part if y is None else y + part
        y = y + b2_ref[...]

        o_ref[i] = (y * m[pad_l:pad_l + tT, :]).astype(o_ref.dtype)

    if K == 1:
        def kernel(xc_ref, m_ref, w1_ref, b1_ref, w2_ref, b2_ref, o_ref):
            for i in range(wB):
                body(i, xc_ref, None, m_ref, w1_ref, b1_ref, w2_ref, b2_ref,
                     o_ref, None)
    else:
        def kernel(xc_ref, xh_ref, m_ref, w1_ref, b1_ref, w2_ref, b2_ref,
                   o_ref, xw_ref):
            for i in range(wB):
                body(i, xc_ref, xh_ref, m_ref, w1_ref, b1_ref, w2_ref, b2_ref,
                     o_ref, xw_ref)
    return kernel


@functools.partial(
    jax.jit,
    static_argnames=("kernel_size", "activation", "causal", "compute_dtype",
                     "target_rows"))
def ffn_pallas(x, x_mask, params, *, kernel_size, activation=None, causal=False,
               compute_dtype=jnp.bfloat16, target_rows=512):
    """x: (B, Cin, T), x_mask: (B, 1, T) -- PyTorch NCT convention."""
    B, Cin, T = x.shape
    K = kernel_size
    pad_l, pad_r = _pad_amounts(K, causal)
    two_pl, two_pr = 2 * pad_l, 2 * pad_r
    H = two_pl + two_pr                       # halo rows per window

    w1, b1, w2, b2 = params["w1"], params["b1"], params["w2"], params["b2"]
    F_ch = w1.shape[0]                        # conv_1 weight: (F, Cin, K)
    Cout = w2.shape[0]                        # conv_2 weight: (Cout, F, K)
    out_isz = np.dtype(x.dtype).itemsize

    # ---- VMEM-driven tiling: ~target_rows output rows per grid step ----
    budget = (_vmem_capacity_bytes() * 3) // 4

    def _tile_bytes(r, c, itemsize):          # VMEM padding: (8, 128) tiles
        return _round_up(max(int(r), 1), 8) * _round_up(max(int(c), 1), 128) * itemsize

    def _est_vmem(wB_, tT_):
        rows1_ = tT_ + pad_l + pad_r
        Wp_ = (_round_up(two_pl, 8) + tT_ + two_pr) if K > 1 else tT_
        est = 2 * K * (_tile_bytes(Cin, F_ch, 2) + _tile_bytes(F_ch, Cout, 2))
        est += 2 * (_tile_bytes(1, F_ch, 4) + _tile_bytes(1, Cout, 4))
        est += 2 * wB_ * _tile_bytes(tT_, Cin, 2)              # x core (dbl buf)
        if K > 1:
            est += 2 * wB_ * _tile_bytes(H, Cin, 2)            # halo (dbl buf)
            est += wB_ * _tile_bytes(Wp_, Cin, 2)              # window scratch
        est += 2 * wB_ * _tile_bytes(rows1_, 1, 4)             # mask (dbl buf)
        est += 2 * wB_ * _tile_bytes(tT_, Cout, out_isz)       # out (dbl buf)
        est += wB_ * (2 * _tile_bytes(rows1_, F_ch, 4)         # h + temp (f32)
                      + _tile_bytes(rows1_, F_ch, 2)           # hm (bf16)
                      + 2 * _tile_bytes(tT_, Cout, 4))         # y + temp (f32)
        return est

    target = max(8, int(target_rows))
    num_t = tT = N = wB = None
    for _ in range(12):
        num_t = max(1, _cdiv(T, target))
        tT = _round_up(_cdiv(T, num_t), 8)
        N = B * num_t
        wB = max(1, min(max(1, target // tT), N, 32))
        while wB > 1 and _est_vmem(wB, tT) > budget:
            wB -= 1
        if _est_vmem(wB, tT) <= budget or tT <= 8:
            break
        target = max(8, tT // 2)

    Tpad = num_t * tT
    N_pad = _round_up(N, wB)
    rows1 = tT + pad_l + pad_r                # hidden rows per window
    L8 = _round_up(two_pl, 8) if K > 1 else 0  # 8-aligned core offset in window
    lead = L8 - two_pl
    Wp = L8 + tT + two_pr                     # window-scratch rows

    # ---- weights: torch (out, in, K) -> per-tap (K, in, out), bf16 ----
    w1_k = jnp.transpose(w1, (2, 1, 0)).astype(compute_dtype)   # (K, Cin, F)
    w2_k = jnp.transpose(w2, (2, 1, 0)).astype(compute_dtype)   # (K, F, Cout)
    b1_2d = b1.reshape(1, F_ch).astype(jnp.float32)
    b2_2d = b2.reshape(1, Cout).astype(jnp.float32)

    # ---- inputs: NCT -> NTC, conv_1 mask pre-applied, true channel width ----
    m_bt1 = jnp.transpose(x_mask, (0, 2, 1)).astype(jnp.float32)      # (B, T, 1)
    x_ntc = (jnp.transpose(x, (0, 2, 1)) * m_bt1).astype(compute_dtype)

    # Core time blocks: zero-pad time to Tpad then a free reshape (no gather).
    x_core = jnp.pad(x_ntc, ((0, 0), (0, Tpad - T), (0, 0)))
    x_core = x_core.reshape(N, tT, Cin)

    # Tiny per-window halo rows (clipped gather + validity mask).
    if K > 1:
        offs = np.concatenate([np.arange(-two_pl, 0),
                               tT + np.arange(two_pr)]).astype(np.int64)
        tpos = np.arange(num_t, dtype=np.int64)[:, None] * tT + offs[None, :]
        hvalid = ((tpos >= 0) & (tpos < T)).astype(np.float32)[None, :, :, None]
        tclip = np.clip(tpos, 0, T - 1)
        x_halo = x_ntc[:, tclip, :] * jnp.asarray(hvalid, compute_dtype)
        x_halo = x_halo.reshape(N, H, Cin)
    else:
        x_halo = None

    # Mask over hidden positions [-pad_l, tT + pad_r) per window (1 lane wide).
    moffs = np.arange(-pad_l, tT + pad_r, dtype=np.int64)
    mpos = np.arange(num_t, dtype=np.int64)[:, None] * tT + moffs[None, :]
    mvalid = ((mpos >= 0) & (mpos < T)).astype(np.float32)[None, :, :, None]
    mclip = np.clip(mpos, 0, T - 1)
    m_win = m_bt1[:, mclip, :] * jnp.asarray(mvalid, jnp.float32)
    m_win = m_win.reshape(N, rows1, 1)

    if N_pad > N:
        x_core = jnp.pad(x_core, ((0, N_pad - N), (0, 0), (0, 0)))
        if K > 1:
            x_halo = jnp.pad(x_halo, ((0, N_pad - N), (0, 0), (0, 0)))
        m_win = jnp.pad(m_win, ((0, N_pad - N), (0, 0), (0, 0)))

    kernel = _make_ffn_kernel(K, tT, rows1, lead, L8, two_pl, two_pr, Wp,
                              pad_l, wB, activation, compute_dtype)

    in_specs = [pl.BlockSpec((wB, tT, Cin), lambda g: (g, 0, 0))]
    args = [x_core]
    if K > 1:
        in_specs.append(pl.BlockSpec((wB, H, Cin), lambda g: (g, 0, 0)))
        args.append(x_halo)
    in_specs += [
        pl.BlockSpec((wB, rows1, 1), lambda g: (g, 0, 0)),
        pl.BlockSpec((K, Cin, F_ch), lambda g: (0, 0, 0)),
        pl.BlockSpec((1, F_ch), lambda g: (0, 0)),
        pl.BlockSpec((K, F_ch, Cout), lambda g: (0, 0, 0)),
        pl.BlockSpec((1, Cout), lambda g: (0, 0)),
    ]
    args += [m_win, w1_k, b1_2d, w2_k, b2_2d]
    scratch = [pltpu.VMEM((wB, Wp, Cin), compute_dtype)] if K > 1 else []

    out_win = pl.pallas_call(
        kernel,
        out_shape=jax.ShapeDtypeStruct((N_pad, tT, Cout), x.dtype),
        grid_spec=pltpu.PrefetchScalarGridSpec(
            num_scalar_prefetch=0,
            grid=(N_pad // wB,),
            in_specs=in_specs,
            out_specs=pl.BlockSpec((wB, tT, Cout), lambda g: (g, 0, 0)),
            scratch_shapes=scratch,
        ),
        compiler_params=pltpu.CompilerParams(
            # Window axis: independent work.  (On v7x, CORE_PARALLEL / an
            # explicit core mesh would split it across the two TensorCores.)
            dimension_semantics=("parallel",),
            vmem_limit_bytes=int(budget),
        ),
    )(*args)

    out = out_win[:N].reshape(B, Tpad, Cout)[:, :T, :]
    return jnp.transpose(out, (0, 2, 1))              # back to (B, Cout, T)


def ffn_reference(x, x_mask, params, *, kernel_size, activation=None, causal=False):
    """Plain-JAX f32 reference matching the PyTorch forward exactly (NCT)."""
    pad_l, pad_r = _pad_amounts(kernel_size, causal)

    def conv1d(inp, w, b):
        inp_p = jnp.pad(inp, ((0, 0), (0, 0), (pad_l, pad_r)))
        out = lax.conv_general_dilated(
            inp_p, w, window_strides=(1,), padding="VALID",
            dimension_numbers=("NCH", "OIH", "NCH"))
        return out + b[None, :, None]

    h = conv1d(x * x_mask, params["w1"], params["b1"])
    if activation == "gelu":
        h = h * jax.nn.sigmoid(1.702 * h)
    else:
        h = jnp.maximum(h, 0.0)
    h = conv1d(h * x_mask, params["w2"], params["b2"])
    return h * x_mask


if __name__ == "__main__":
    key = jax.random.PRNGKey(0)

    def make_case(case_key, B, Cin, Cout, F_ch, T, K, lengths):
        keys = jax.random.split(case_key, 5)
        x = jax.random.normal(keys[0], (B, Cin, T), jnp.float32)
        x_mask = (jnp.arange(T)[None, None, :]
                  < jnp.asarray(lengths)[:, None, None]).astype(jnp.float32)
        bound1 = 1.0 / float(np.sqrt(Cin * K))
        bound2 = 1.0 / float(np.sqrt(F_ch * K))
        params = {
            "w1": jax.random.uniform(keys[1], (F_ch, Cin, K), jnp.float32, -bound1, bound1),
            "b1": jax.random.uniform(keys[2], (F_ch,), jnp.float32, -bound1, bound1),
            "w2": jax.random.uniform(keys[3], (Cout, F_ch, K), jnp.float32, -bound2, bound2),
            "b2": jax.random.uniform(keys[4], (F_ch,) if False else (Cout,), jnp.float32, -bound2, bound2),
        }
        return x, x_mask, params

    cases = [
        # (B, Cin, Cout, F, T, K, activation, causal, lengths, target_rows)
        (2, 32, 48, 64, 16, 3, "gelu", False, [16, 11], 512),    # packed windows (wB=2)
        (2, 32, 32, 64, 40, 5, None, True, [40, 23], 512),       # causal + relu + K=5
        (2, 32, 32, 64, 300, 3, "gelu", False, [300, 217], 128), # real inter-tile halos
        (2, 16, 24, 32, 24, 1, None, False, [24, 17], 512),      # K=1 path (no halo)
        (1, 192, 192, 768, 256, 3, "gelu", False, [200], 512),   # VITS-like channels
    ]
    for (B, Cin, Cout, F_ch, T, K, act, causal, lengths, tgt) in cases:
        key, sub = jax.random.split(key)
        x, x_mask, params = make_case(sub, B, Cin, Cout, F_ch, T, K, lengths)
        out = ffn_pallas(x, x_mask, params, kernel_size=K,
                         activation=act, causal=causal, target_rows=tgt)
        out = jax.block_until_ready(out)
        ref = ffn_reference(x, x_mask, params, kernel_size=K,
                            activation=act, causal=causal)
        # bf16 MXU inputs (f32 accumulation) + approx reciprocal -> loosened
        # tolerance vs the f32 reference.
        np.testing.assert_allclose(np.asarray(out), np.asarray(ref),
                                   rtol=2e-2, atol=2e-2)

    print("KERNEL_OK")
</pallas_src>

<mosaic_0001>
module attributes {stable_mosaic.version = 11 : i64} {
  func.func @kernel(%arg0: i32, %arg1: memref<2x16x32xbf16, #tpu.memory_space<vmem>>, %arg2: memref<2x4x32xbf16, #tpu.memory_space<vmem>>, %arg3: memref<2x18x1xf32, #tpu.memory_space<vmem>>, %arg4: memref<3x32x64xbf16, #tpu.memory_space<vmem>>, %arg5: memref<1x64xf32, #tpu.memory_space<vmem>>, %arg6: memref<3x64x48xbf16, #tpu.memory_space<vmem>>, %arg7: memref<1x48xf32, #tpu.memory_space<vmem>>, %arg8: memref<2x16x48xf32, #tpu.memory_space<vmem>>, %arg9: memref<2x26x32xbf16, #tpu.memory_space<vmem>>) attributes {dimension_semantics = [#tpu.dimension_semantics<parallel>], iteration_bounds = array<i64: 1>, scalar_prefetch = 0 : i64, scratch_operands = 1 : i64, tpu.core_type = #tpu.core_type<tc>, window_params = [{transform_indices = @transform_0, window_bounds = array<i64: 2, 16, 32>}, {transform_indices = @transform_1, window_bounds = array<i64: 2, 4, 32>}, {transform_indices = @transform_2, window_bounds = array<i64: 2, 18, 1>}, {pipeline_mode = #tpu.pipeline_mode<synchronous>, transform_indices = @transform_3, window_bounds = array<i64: 3, 32, 64>}, {pipeline_mode = #tpu.pipeline_mode<synchronous>, transform_indices = @transform_4, window_bounds = array<i64: 1, 64>}, {pipeline_mode = #tpu.pipeline_mode<synchronous>, transform_indices = @transform_5, window_bounds = array<i64: 3, 64, 48>}, {pipeline_mode = #tpu.pipeline_mode<synchronous>, transform_indices = @transform_6, window_bounds = array<i64: 1, 48>}, {transform_indices = @transform_7, window_bounds = array<i64: 2, 16, 48>}]} {
    %c0 = arith.constant 0 : index
    %c0_0 = arith.constant 0 : index
    %c0_1 = arith.constant 0 : index
    %0 = vector.load %arg2[%c0, %c0_0, %c0_1] : memref<2x4x32xbf16, #tpu.memory_space<vmem>>, vector<1x2x32xbf16>
    %1 = vector.shape_cast %0 : vector<1x2x32xbf16> to vector<2x32xbf16>
    %c0_2 = arith.constant 0 : index
    %c6 = arith.constant 6 : index
    %c0_3 = arith.constant 0 : index
    %2 = vector.load %arg9[%c0_2, %c6, %c0_3] : memref<2x26x32xbf16, #tpu.memory_space<vmem>>, vector<1x2x32xbf16>
    %3 = vector.shape_cast %2 : vector<1x2x32xbf16> to vector<2x32xbf16>
    %4 = vector.shape_cast %1 : vector<2x32xbf16> to vector<1x2x32xbf16>
    tpu.vector_store %arg9[%c0_2, %c6, %c0_3], %4 {strides = array<i32>} : memref<2x26x32xbf16, #tpu.memory_space<vmem>>, vector<1x2x32xbf16>,
    %c0_4 = arith.constant 0 : index
    %c0_5 = arith.constant 0 : index
    %c0_6 = arith.constant 0 : index
    %5 = vector.load %arg1[%c0_4, %c0_5, %c0_6] : memref<2x16x32xbf16, #tpu.memory_space<vmem>>, vector<1x16x32xbf16>
    %6 = vector.shape_cast %5 : vector<1x16x32xbf16> to vector<16x32xbf16>
    %c0_7 = arith.constant 0 : index
    %c8 = arith.constant 8 : index
    %c0_8 = arith.constant 0 : index
    %7 = vector.load %arg9[%c0_7, %c8, %c0_8] : memref<2x26x32xbf16, #tpu.memory_space<vmem>>, vector<1x16x32xbf16>
    %8 = vector.shape_cast %7 : vector<1x16x32xbf16> to vector<16x32xbf16>
    %9 = vector.shape_cast %6 : vector<16x32xbf16> to vector<1x16x32xbf16>
    tpu.vector_store %arg9[%c0_7, %c8, %c0_8], %9 {strides = array<i32>} : memref<2x26x32xbf16, #tpu.memory_space<vmem>>, vector<1x16x32xbf16>,
    %c0_9 = arith.constant 0 : index
    %c2 = arith.constant 2 : index
    %c0_10 = arith.constant 0 : index
    %10 = vector.load %arg2[%c0_9, %c2, %c0_10] : memref<2x4x32xbf16, #tpu.memory_space<vmem>>, vector<1x2x32xbf16>
    %11 = vector.shape_cast %10 : vector<1x2x32xbf16> to vector<2x32xbf16>
    %c0_11 = arith.constant 0 : index
    %c24 = arith.constant 24 : index
    %c0_12 = arith.constant 0 : index
    %12 = vector.load %arg9[%c0_11, %c24, %c0_12] : memref<2x26x32xbf16, #tpu.memory_space<vmem>>, vector<1x2x32xbf16>
    %13 = vector.shape_cast %12 : vector<1x2x32xbf16> to vector<2x32xbf16>
    %14 = vector.shape_cast %11 : vector<2x32xbf16> to vector<1x2x32xbf16>
    tpu.vector_store %arg9[%c0_11, %c24, %c0_12], %14 {strides = array<i32>} : memref<2x26x32xbf16, #tpu.memory_space<vmem>>, vector<1x2x32xbf16>,
    %c0_13 = arith.constant 0 : index
    %c6_14 = arith.constant 6 : index
    %c0_15 = arith.constant 0 : index
    %15 = vector.load %arg9[%c0_13, %c6_14, %c0_15] : memref<2x26x32xbf16, #tpu.memory_space<vmem>>, vector<1x18x32xbf16>
    %16 = vector.shape_cast %15 : vector<1x18x32xbf16> to vector<18x32xbf16>
    %c0_16 = arith.constant 0 : index
    %c0_17 = arith.constant 0 : index
    %c0_18 = arith.constant 0 : index
    %17 = vector.load %arg4[%c0_16, %c0_17, %c0_18] : memref<3x32x64xbf16, #tpu.memory_space<vmem>>, vector<1x32x64xbf16>
    %18 = vector.shape_cast %17 : vector<1x32x64xbf16> to vector<32x64xbf16>
    %cst = arith.constant dense<0.000000e+00> : vector<18x64xf32>
    %19 = tpu.matmul %16, %18, %cst {dimension_numbers = #tpu.dot_dimension_numbers<[1], [0], [0], [1], [0, 0, 1, 1], [], []>} : vector<18x32xbf16>, vector<32x64xbf16>, vector<18x64xf32> -> vector<18x64xf32>
    %c0_19 = arith.constant 0 : index
    %c7 = arith.constant 7 : index
    %c0_20 = arith.constant 0 : index
    %20 = vector.load %arg9[%c0_19, %c7, %c0_20] : memref<2x26x32xbf16, #tpu.memory_space<vmem>>, vector<1x18x32xbf16>
    %21 = vector.shape_cast %20 : vector<1x18x32xbf16> to vector<18x32xbf16>
    %c1 = arith.constant 1 : index
    %c0_21 = arith.constant 0 : index
    %c0_22 = arith.constant 0 : index
    %22 = vector.load %arg4[%c1, %c0_21, %c0_22] : memref<3x32x64xbf16, #tpu.memory_space<vmem>>, vector<1x32x64xbf16>
    %23 = vector.shape_cast %22 : vector<1x32x64xbf16> to vector<32x64xbf16>
    %cst_23 = arith.constant dense<0.000000e+00> : vector<18x64xf32>
    %24 = tpu.matmul %21, %23, %cst_23 {dimension_numbers = #tpu.dot_dimension_numbers<[1], [0], [0], [1], [0, 0, 1, 1], [], []>} : vector<18x32xbf16>, vector<32x64xbf16>, vector<18x64xf32> -> vector<18x64xf32>
    %25 = arith.addf %19, %24 : vector<18x64xf32>
    %c0_24 = arith.constant 0 : index
    %c8_25 = arith.constant 8 : index
    %c0_26 = arith.constant 0 : index
    %26 = vector.load %arg9[%c0_24, %c8_25, %c0_26] : memref<2x26x32xbf16, #tpu.memory_space<vmem>>, vector<1x18x32xbf16>
    %27 = vector.shape_cast %26 : vector<1x18x32xbf16> to vector<18x32xbf16>
    %c2_27 = arith.constant 2 : index
    %c0_28 = arith.constant 0 : index
    %c0_29 = arith.constant 0 : index
    %28 = vector.load %arg4[%c2_27, %c0_28, %c0_29] : memref<3x32x64xbf16, #tpu.memory_space<vmem>>, vector<1x32x64xbf16>
    %29 = vector.shape_cast %28 : vector<1x32x64xbf16> to vector<32x64xbf16>
    %cst_30 = arith.constant dense<0.000000e+00> : vector<18x64xf32>
    %30 = tpu.matmul %27, %29, %cst_30 {dimension_numbers = #tpu.dot_dimension_numbers<[1], [0], [0], [1], [0, 0, 1, 1], [], []>} : vector<18x32xbf16>, vector<32x64xbf16>, vector<18x64xf32> -> vector<18x64xf32>
    %31 = arith.addf %25, %30 : vector<18x64xf32>
    %c0_31 = arith.constant 0 : index
    %c0_32 = arith.constant 0 : index
    %32 = vector.load %arg5[%c0_31, %c0_32] : memref<1x64xf32, #tpu.memory_space<vmem>>, vector<1x64xf32>
    %33 = vector.broadcast %32 : vector<1x64xf32> to vector<18x64xf32>
    %34 = arith.addf %31, %33 : vector<18x64xf32>
    %cst_33 = arith.constant -1.702000e+00 : f32
    %35 = vector.broadcast %cst_33 : f32 to vector<18x64xf32>
    %36 = arith.mulf %35, %34 : vector<18x64xf32>
    %37 = math.exp %36 : vector<18x64xf32>
    %cst_34 = arith.constant 1.000000e+00 : f32
    %38 = vector.broadcast %cst_34 : f32 to vector<18x64xf32>
    %39 = arith.addf %38, %37 : vector<18x64xf32>
    %40 = tpu.reciprocal %39 {approx = true} : vector<18x64xf32> -> vector<18x64xf32>
    %41 = arith.mulf %34, %40 : vector<18x64xf32>
    %c0_35 = arith.constant 0 : index
    %c0_36 = arith.constant 0 : index
    %c0_37 = arith.constant 0 : index
    %42 = vector.load %arg3[%c0_35, %c0_36, %c0_37] : memref<2x18x1xf32, #tpu.memory_space<vmem>>, vector<1x18x1xf32>
    %43 = vector.shape_cast %42 : vector<1x18x1xf32> to vector<18x1xf32>
    %44 = vector.broadcast %43 : vector<18x1xf32> to vector<18x64xf32>
    %45 = arith.mulf %41, %44 : vector<18x64xf32>
    %46 = arith.truncf %45 : vector<18x64xf32> to vector<18x64xbf16>
    %47 = vector.extract_strided_slice %46 {offsets = [0, 0], sizes = [16, 64], strides = [1, 1]} : vector<18x64xbf16> to vector<16x64xbf16>
    %c0_38 = arith.constant 0 : index
    %c0_39 = arith.constant 0 : index
    %c0_40 = arith.constant 0 : index
    %48 = vector.load %arg6[%c0_38, %c0_39, %c0_40] : memref<3x64x48xbf16, #tpu.memory_space<vmem>>, vector<1x64x48xbf16>
    %49 = vector.shape_cast %48 : vector<1x64x48xbf16> to vector<64x48xbf16>
    %cst_41 = arith.constant dense<0.000000e+00> : vector<16x48xf32>
    %50 = tpu.matmul %47, %49, %cst_41 {dimension_numbers = #tpu.dot_dimension_numbers<[1], [0], [0], [1], [0, 0, 1, 1], [], []>} : vector<16x64xbf16>, vector<64x48xbf16>, vector<16x48xf32> -> vector<16x48xf32>
    %51 = vector.extract_strided_slice %46 {offsets = [1, 0], sizes = [16, 64], strides = [1, 1]} : vector<18x64xbf16> to vector<16x64xbf16>
    %c1_42 = arith.constant 1 : index
    %c0_43 = arith.constant 0 : index
    %c0_44 = arith.constant 0 : index
    %52 = vector.load %arg6[%c1_42, %c0_43, %c0_44] : memref<3x64x48xbf16, #tpu.memory_space<vmem>>, vector<1x64x48xbf16>
    %53 = vector.shape_cast %52 : vector<1x64x48xbf16> to vector<64x48xbf16>
    %cst_45 = arith.constant dense<0.000000e+00> : vector<16x48xf32>
    %54 = tpu.matmul %51, %53, %cst_45 {dimension_numbers = #tpu.dot_dimension_numbers<[1], [0], [0], [1], [0, 0, 1, 1], [], []>} : vector<16x64xbf16>, vector<64x48xbf16>, vector<16x48xf32> -> vector<16x48xf32>
    %55 = arith.addf %50, %54 : vector<16x48xf32>
    %56 = vector.extract_strided_slice %46 {offsets = [2, 0], sizes = [16, 64], strides = [1, 1]} : vector<18x64xbf16> to vector<16x64xbf16>
    %c2_46 = arith.constant 2 : index
    %c0_47 = arith.constant 0 : index
    %c0_48 = arith.constant 0 : index
    %57 = vector.load %arg6[%c2_46, %c0_47, %c0_48] : memref<3x64x48xbf16, #tpu.memory_space<vmem>>, vector<1x64x48xbf16>
    %58 = vector.shape_cast %57 : vector<1x64x48xbf16> to vector<64x48xbf16>
    %cst_49 = arith.constant dense<0.000000e+00> : vector<16x48xf32>
    %59 = tpu.matmul %56, %58, %cst_49 {dimension_numbers = #tpu.dot_dimension_numbers<[1], [0], [0], [1], [0, 0, 1, 1], [], []>} : vector<16x64xbf16>, vector<64x48xbf16>, vector<16x48xf32> -> vector<16x48xf32>
    %60 = arith.addf %55, %59 : vector<16x48xf32>
    %c0_50 = arith.constant 0 : index
    %c0_51 = arith.constant 0 : index
    %61 = vector.load %arg7[%c0_50, %c0_51] : memref<1x48xf32, #tpu.memory_space<vmem>>, vector<1x48xf32>
    %62 = vector.broadcast %61 : vector<1x48xf32> to vector<16x48xf32>
    %63 = arith.addf %60, %62 : vector<16x48xf32>
    %64 = vector.extract_strided_slice %43 {offsets = [1, 0], sizes = [16, 1], strides = [1, 1]} : vector<18x1xf32> to vector<16x1xf32>
    %65 = vector.broadcast %64 : vector<16x1xf32> to vector<16x48xf32>
    %66 = arith.mulf %63, %65 : vector<16x48xf32>
    %c0_52 = arith.constant 0 : index
    %c0_53 = arith.constant 0 : index
    %c0_54 = arith.constant 0 : index
    %67 = vector.load %arg8[%c0_52, %c0_53, %c0_54] : memref<2x16x48xf32, #tpu.memory_space<vmem>>, vector<1x16x48xf32>
    %68 = vector.shape_cast %67 : vector<1x16x48xf32> to vector<16x48xf32>
    %69 = vector.shape_cast %66 : vector<16x48xf32> to vector<1x16x48xf32>
    tpu.vector_store %arg8[%c0_52, %c0_53, %c0_54], %69 {strides = array<i32>} : memref<2x16x48xf32, #tpu.memory_space<vmem>>, vector<1x16x48xf32>,
    %c1_55 = arith.constant 1 : index
    %c0_56 = arith.constant 0 : index
    %c0_57 = arith.constant 0 : index
    %70 = vector.load %arg2[%c1_55, %c0_56, %c0_57] : memref<2x4x32xbf16, #tpu.memory_space<vmem>>, vector<1x2x32xbf16>
    %71 = vector.shape_cast %70 : vector<1x2x32xbf16> to vector<2x32xbf16>
    %c1_58 = arith.constant 1 : index
    %c6_59 = arith.constant 6 : index
    %c0_60 = arith.constant 0 : index
    %72 = vector.load %arg9[%c1_58, %c6_59, %c0_60] : memref<2x26x32xbf16, #tpu.memory_space<vmem>>, vector<1x2x32xbf16>
    %73 = vector.shape_cast %72 : vector<1x2x32xbf16> to vector<2x32xbf16>
    %74 = vector.shape_cast %71 : vector<2x32xbf16> to vector<1x2x32xbf16>
    tpu.vector_store %arg9[%c1_58, %c6_59, %c0_60], %74 {strides = array<i32>} : memref<2x26x32xbf16, #tpu.memory_space<vmem>>, vector<1x2x32xbf16>,
    %c1_61 = arith.constant 1 : index
    %c0_62 = arith.constant 0 : index
    %c0_63 = arith.constant 0 : index
    %75 = vector.load %arg1[%c1_61, %c0_62, %c0_63] : memref<2x16x32xbf16, #tpu.memory_space<vmem>>, vector<1x16x32xbf16>
    %76 = vector.shape_cast %75 : vector<1x16x32xbf16> to vector<16x32xbf16>
    %c1_64 = arith.constant 1 : index
    %c8_65 = arith.constant 8 : index
    %c0_66 = arith.constant 0 : index
    %77 = vector.load %arg9[%c1_64, %c8_65, %c0_66] : memref<2x26x32xbf16, #tpu.memory_space<vmem>>, vector<1x16x32xbf16>
    %78 = vector.shape_cast %77 : vector<1x16x32xbf16> to vector<16x32xbf16>
    %79 = vector.shape_cast %76 : vector<16x32xbf16> to vector<1x16x32xbf16>
    tpu.vector_store %arg9[%c1_64, %c8_65, %c0_66], %79 {strides = array<i32>} : memref<2x26x32xbf16, #tpu.memory_space<vmem>>, vector<1x16x32xbf16>,
    %c1_67 = arith.constant 1 : index
    %c2_68 = arith.constant 2 : index
    %c0_69 = arith.constant 0 : index
    %80 = vector.load %arg2[%c1_67, %c2_68, %c0_69] : memref<2x4x32xbf16, #tpu.memory_space<vmem>>, vector<1x2x32xbf16>
    %81 = vector.shape_cast %80 : vector<1x2x32xbf16> to vector<2x32xbf16>
    %c1_70 = arith.constant 1 : index
    %c24_71 = arith.constant 24 : index
    %c0_72 = arith.constant 0 : index
    %82 = vector.load %arg9[%c1_70, %c24_71, %c0_72] : memref<2x26x32xbf16, #tpu.memory_space<vmem>>, vector<1x2x32xbf16>
    %83 = vector.shape_cast %82 : vector<1x2x32xbf16> to vector<2x32xbf16>
    %84 = vector.shape_cast %81 : vector<2x32xbf16> to vector<1x2x32xbf16>
    tpu.vector_store %arg9[%c1_70, %c24_71, %c0_72], %84 {strides = array<i32>} : memref<2x26x32xbf16, #tpu.memory_space<vmem>>, vector<1x2x32xbf16>,
    %c1_73 = arith.constant 1 : index
    %c6_74 = arith.constant 6 : index
    %c0_75 = arith.constant 0 : index
    %85 = vector.load %arg9[%c1_73, %c6_74, %c0_75] : memref<2x26x32xbf16, #tpu.memory_space<vmem>>, vector<1x18x32xbf16>
    %86 = vector.shape_cast %85 : vector<1x18x32xbf16> to vector<18x32xbf16>
    %c0_76 = arith.constant 0 : index
    %c0_77 = arith.constant 0 : index
    %c0_78 = arith.constant 0 : index
    %87 = vector.load %arg4[%c0_76, %c0_77, %c0_78] : memref<3x32x64xbf16, #tpu.memory_space<vmem>>, vector<1x32x64xbf16>
    %88 = vector.shape_cast %87 : vector<1x32x64xbf16> to vector<32x64xbf16>
    %cst_79 = arith.constant dense<0.000000e+00> : vector<18x64xf32>
    %89 = tpu.matmul %86, %88, %cst_79 {dimension_numbers = #tpu.dot_dimension_numbers<[1], [0], [0], [1], [0, 0, 1, 1], [], []>} : vector<18x32xbf16>, vector<32x64xbf16>, vector<18x64xf32> -> vector<18x64xf32>
    %c1_80 = arith.constant 1 : index
    %c7_81 = arith.constant 7 : index
    %c0_82 = arith.constant 0 : index
    %90 = vector.load %arg9[%c1_80, %c7_81, %c0_82] : memref<2x26x32xbf16, #tpu.memory_space<vmem>>, vector<1x18x32xbf16>
    %91 = vector.shape_cast %90 : vector<1x18x32xbf16> to vector<18x32xbf16>
    %c1_83 = arith.constant 1 : index
    %c0_84 = arith.constant 0 : index
    %c0_85 = arith.constant 0 : index
    %92 = vector.load %arg4[%c1_83, %c0_84, %c0_85] : memref<3x32x64xbf16, #tpu.memory_space<vmem>>, vector<1x32x64xbf16>
    %93 = vector.shape_cast %92 : vector<1x32x64xbf16> to vector<32x64xbf16>
    %cst_86 = arith.constant dense<0.000000e+00> : vector<18x64xf32>
    %94 = tpu.matmul %91, %93, %cst_86 {dimension_numbers = #tpu.dot_dimension_numbers<[1], [0], [0], [1], [0, 0, 1, 1], [], []>} : vector<18x32xbf16>, vector<32x64xbf16>, vector<18x64xf32> -> vector<18x64xf32>
    %95 = arith.addf %89, %94 : vector<18x64xf32>
    %c1_87 = arith.constant 1 : index
    %c8_88 = arith.constant 8 : index
    %c0_89 = arith.constant 0 : index
    %96 = vector.load %arg9[%c1_87, %c8_88, %c0_89] : memref<2x26x32xbf16, #tpu.memory_space<vmem>>, vector<1x18x32xbf16>
    %97 = vector.shape_cast %96 : vector<1x18x32xbf16> to vector<18x32xbf16>
    %c2_90 = arith.constant 2 : index
    %c0_91 = arith.constant 0 : index
    %c0_92 = arith.constant 0 : index
    %98 = vector.load %arg4[%c2_90, %c0_91, %c0_92] : memref<3x32x64xbf16, #tpu.memory_space<vmem>>, vector<1x32x64xbf16>
    %99 = vector.shape_cast %98 : vector<1x32x64xbf16> to vector<32x64xbf16>
    %cst_93 = arith.constant dense<0.000000e+00> : vector<18x64xf32>
    %100 = tpu.matmul %97, %99, %cst_93 {dimension_numbers = #tpu.dot_dimension_numbers<[1], [0], [0], [1], [0, 0, 1, 1], [], []>} : vector<18x32xbf16>, vector<32x64xbf16>, vector<18x64xf32> -> vector<18x64xf32>
    %101 = arith.addf %95, %100 : vector<18x64xf32>
    %c0_94 = arith.constant 0 : index
    %c0_95 = arith.constant 0 : index
    %102 = vector.load %arg5[%c0_94, %c0_95] : memref<1x64xf32, #tpu.memory_space<vmem>>, vector<1x64xf32>
    %103 = vector.broadcast %102 : vector<1x64xf32> to vector<18x64xf32>
    %104 = arith.addf %101, %103 : vector<18x64xf32>
    %cst_96 = arith.constant -1.702000e+00 : f32
    %105 = vector.broadcast %cst_96 : f32 to vector<18x64xf32>
    %106 = arith.mulf %105, %104 : vector<18x64xf32>
    %107 = math.exp %106 : vector<18x64xf32>
    %cst_97 = arith.constant 1.000000e+00 : f32
    %108 = vector.broadcast %cst_97 : f32 to vector<18x64xf32>
    %109 = arith.addf %108, %107 : vector<18x64xf32>
    %110 = tpu.reciprocal %109 {approx = true} : vector<18x64xf32> -> vector<18x64xf32>
    %111 = arith.mulf %104, %110 : vector<18x64xf32>
    %c1_98 = arith.constant 1 : index
    %c0_99 = arith.constant 0 : index
    %c0_100 = arith.constant 0 : index
    %112 = vector.load %arg3[%c1_98, %c0_99, %c0_100] : memref<2x18x1xf32, #tpu.memory_space<vmem>>, vector<1x18x1xf32>
    %113 = vector.shape_cast %112 : vector<1x18x1xf32> to vector<18x1xf32>
    %114 = vector.broadcast %113 : vector<18x1xf32> to vector<18x64xf32>
    %115 = arith.mulf %111, %114 : vector<18x64xf32>
    %116 = arith.truncf %115 : vector<18x64xf32> to vector<18x64xbf16>
    %117 = vector.extract_strided_slice %116 {offsets = [0, 0], sizes = [16, 64], strides = [1, 1]} : vector<18x64xbf16> to vector<16x64xbf16>
    %c0_101 = arith.constant 0 : index
    %c0_102 = arith.constant 0 : index
    %c0_103 = arith.constant 0 : index
    %118 = vector.load %arg6[%c0_101, %c0_102, %c0_103] : memref<3x64x48xbf16, #tpu.memory_space<vmem>>, vector<1x64x48xbf16>
    %119 = vector.shape_cast %118 : vector<1x64x48xbf16> to vector<64x48xbf16>
    %cst_104 = arith.constant dense<0.000000e+00> : vector<16x48xf32>
    %120 = tpu.matmul %117, %119, %cst_104 {dimension_numbers = #tpu.dot_dimension_numbers<[1], [0], [0], [1], [0, 0, 1, 1], [], []>} : vector<16x64xbf16>, vector<64x48xbf16>, vector<16x48xf32> -> vector<16x48xf32>
    %121 = vector.extract_strided_slice %116 {offsets = [1, 0], sizes = [16, 64], strides = [1, 1]} : vector<18x64xbf16> to vector<16x64xbf16>
    %c1_105 = arith.constant 1 : index
    %c0_106 = arith.constant 0 : index
    %c0_107 = arith.constant 0 : index
    %122 = vector.load %arg6[%c1_105, %c0_106, %c0_107] : memref<3x64x48xbf16, #tpu.memory_space<vmem>>, vector<1x64x48xbf16>
    %123 = vector.shape_cast %122 : vector<1x64x48xbf16> to vector<64x48xbf16>
    %cst_108 = arith.constant dense<0.000000e+00> : vector<16x48xf32>
    %124 = tpu.matmul %121, %123, %cst_108 {dimension_numbers = #tpu.dot_dimension_numbers<[1], [0], [0], [1], [0, 0, 1, 1], [], []>} : vector<16x64xbf16>, vector<64x48xbf16>, vector<16x48xf32> -> vector<16x48xf32>
    %125 = arith.addf %120, %124 : vector<16x48xf32>
    %126 = vector.extract_strided_slice %116 {offsets = [2, 0], sizes = [16, 64], strides = [1, 1]} : vector<18x64xbf16> to vector<16x64xbf16>
    %c2_109 = arith.constant 2 : index
    %c0_110 = arith.constant 0 : index
    %c0_111 = arith.constant 0 : index
    %127 = vector.load %arg6[%c2_109, %c0_110, %c0_111] : memref<3x64x48xbf16, #tpu.memory_space<vmem>>, vector<1x64x48xbf16>
    %128 = vector.shape_cast %127 : vector<1x64x48xbf16> to vector<64x48xbf16>
    %cst_112 = arith.constant dense<0.000000e+00> : vector<16x48xf32>
    %129 = tpu.matmul %126, %128, %cst_112 {dimension_numbers = #tpu.dot_dimension_numbers<[1], [0], [0], [1], [0, 0, 1, 1], [], []>} : vector<16x64xbf16>, vector<64x48xbf16>, vector<16x48xf32> -> vector<16x48xf32>
    %130 = arith.addf %125, %129 : vector<16x48xf32>
    %c0_113 = arith.constant 0 : index
    %c0_114 = arith.constant 0 : index
    %131 = vector.load %arg7[%c0_113, %c0_114] : memref<1x48xf32, #tpu.memory_space<vmem>>, vector<1x48xf32>
    %132 = vector.broadcast %131 : vector<1x48xf32> to vector<16x48xf32>
    %133 = arith.addf %130, %132 : vector<16x48xf32>
    %134 = vector.extract_strided_slice %113 {offsets = [1, 0], sizes = [16, 1], strides = [1, 1]} : vector<18x1xf32> to vector<16x1xf32>
    %135 = vector.broadcast %134 : vector<16x1xf32> to vector<16x48xf32>
    %136 = arith.mulf %133, %135 : vector<16x48xf32>
    %c1_115 = arith.constant 1 : index
    %c0_116 = arith.constant 0 : index
    %c0_117 = arith.constant 0 : index
    %137 = vector.load %arg8[%c1_115, %c0_116, %c0_117] : memref<2x16x48xf32, #tpu.memory_space<vmem>>, vector<1x16x48xf32>
    %138 = vector.shape_cast %137 : vector<1x16x48xf32> to vector<16x48xf32>
    %139 = vector.shape_cast %136 : vector<16x48xf32> to vector<1x16x48xf32>
    tpu.vector_store %arg8[%c1_115, %c0_116, %c0_117], %139 {strides = array<i32>} : memref<2x16x48xf32, #tpu.memory_space<vmem>>, vector<1x16x48xf32>,
    return
  }
  func.func @transform_0(%arg0: i32) -> (i32, i32, i32) {
    %c0_i32 = arith.constant 0 : i32
    %c0_i32_0 = arith.constant 0 : i32
    %c0_i32_1 = arith.constant 0 : i32
    return %arg0, %c0_i32, %c0_i32_0 : i32, i32, i32
  }
  func.func @transform_1(%arg0: i32) -> (i32, i32, i32) {
    %c0_i32 = arith.constant 0 : i32
    %c0_i32_0 = arith.constant 0 : i32
    %c0_i32_1 = arith.constant 0 : i32
    return %arg0, %c0_i32, %c0_i32_0 : i32, i32, i32
  }
  func.func @transform_2(%arg0: i32) -> (i32, i32, i32) {
    %c0_i32 = arith.constant 0 : i32
    %c0_i32_0 = arith.constant 0 : i32
    %c0_i32_1 = arith.constant 0 : i32
    return %arg0, %c0_i32, %c0_i32_0 : i32, i32, i32
  }
  func.func @transform_3(%arg0: i32) -> (i32, i32, i32) {
    %c0_i32 = arith.constant 0 : i32
    %c0_i32_0 = arith.constant 0 : i32
    %c0_i32_1 = arith.constant 0 : i32
    %c0_i32_2 = arith.constant 0 : i32
    return %c0_i32, %c0_i32_0, %c0_i32_1 : i32, i32, i32
  }
  func.func @transform_4(%arg0: i32) -> (i32, i32) {
    %c0_i32 = arith.constant 0 : i32
    %c0_i32_0 = arith.constant 0 : i32
    %c0_i32_1 = arith.constant 0 : i32
    return %c0_i32, %c0_i32_0 : i32, i32
  }
  func.func @transform_5(%arg0: i32) -> (i32, i32, i32) {
    %c0_i32 = arith.constant 0 : i32
    %c0_i32_0 = arith.constant 0 : i32
    %c0_i32_1 = arith.constant 0 : i32
    %c0_i32_2 = arith.constant 0 : i32
    return %c0_i32, %c0_i32_0, %c0_i32_1 : i32, i32, i32
  }
  func.func @transform_6(%arg0: i32) -> (i32, i32) {
    %c0_i32 = arith.constant 0 : i32
    %c0_i32_0 = arith.constant 0 : i32
    %c0_i32_1 = arith.constant 0 : i32
    return %c0_i32, %c0_i32_0 : i32, i32
  }
  func.func @transform_7(%arg0: i32) -> (i32, i32, i32) {
    %c0_i32 = arith.constant 0 : i32
    %c0_i32_0 = arith.constant 0 : i32
    %c0_i32_1 = arith.constant 0 : i32
    return %arg0, %c0_i32, %c0_i32_0 : i32, i32, i32
  }
}

</mosaic_0001>

<llo_original>
// kernel: ffn_pallas.1
$region0: #{ffn_pallas.1}
  #allocation0 [shape = 'u32[]', space=smem, size = 0x4, offset = 0x4, fixed_abs, tag = 'smem constant byte address 0x4 - core index']
  #allocation1 [shape = 'u32[144,128]{1,0:T(1,128)}', space=vmem, size = 0x12000, scoped, tag = 'internal scratch']
  #allocation2 [shape = 'bf16[2,26,32]{2,1,0:T(8,128)(2,1)}', space=vmem, size = 0x4000, scoped, tag = 'scratch operand']
  %s0 = inlined_call_operand.vmem [shape: bf16[2,16,32], index: 0, kind: input, shape index: {}]
  %s1 = inlined_call_operand.vmem [shape: bf16[2,4,32], index: 1, kind: input, shape index: {}]
  %s2 = inlined_call_operand.vmem [shape: f32[2,18,1], index: 2, kind: input, shape index: {}]
  %s3 = inlined_call_operand.vmem [shape: bf16[3,32,64], index: 3, kind: input, shape index: {}]
  %s4 = inlined_call_operand.vmem [shape: f32[1,64], index: 4, kind: input, shape index: {}]
  %s5 = inlined_call_operand.vmem [shape: bf16[3,64,48], index: 5, kind: input, shape index: {}]
  %s6 = inlined_call_operand.vmem [shape: f32[1,48], index: 6, kind: input, shape index: {}]
  %s7 = inlined_call_operand.hbm [shape: f32[2,16,48], index: 7, kind: output, shape index: {}]
  %s8 = sld [smem:[#allocation0]]
  $region38: #{ffn_pallas.1} parent=0
    _
  %s10 = ssub.s32 1, %s8
  %s11 = scalar_select 0, %s10, %s8
  $region1: #{ffn_pallas.1} parent=0
    #allocation3 [shape = 'u8[16384]{0}', space=vmem, size = 0x4000, scoped, tag = 'output window, operand 0, single buffered']
    #allocation4 [shape = 's32[1]{0}', space=sflag, size = 0x4, scoped, tag = 'scoped memory for ffn_pallas.1']
    %12 = vsyncpa [#allocation4], 0
    // Predicated region
    $region2: #{ffn_pallas.1} parent=1 // pred_check
      _
    $region3: #{ffn_pallas.1} parent=1 // pred_check_branch
      %14 = sbr.rel (0) target = $region5
    $region4: #{ffn_pallas.1} parent=1 // pred_region
      _
    $region5: #{ffn_pallas.1} parent=1 // pred_fallthru
      _
    // Predicated region
    $region6: #{ffn_pallas.1} parent=1 // pred_check
      _
    $region7: #{ffn_pallas.1} parent=1 // pred_check_branch
      %16 = sbr.rel (0) target = $region9
    $region8: #{ffn_pallas.1} parent=1 // pred_region
      _
    $region9: #{ffn_pallas.1} parent=1 // pred_fallthru
      _
    // Predicated region
    $region10: #{ffn_pallas.1} parent=1 // pred_check
      _
    $region11: #{ffn_pallas.1} parent=1 // pred_check_branch
      %18 = sbr.rel (0) target = $region13
    $region12: #{ffn_pallas.1} parent=1 // pred_region
      _
    $region13: #{ffn_pallas.1} parent=1 // pred_fallthru
      _
    // Predicated region
    $region14: #{ffn_pallas.1} parent=1 // pred_check
      _
    $region15: #{ffn_pallas.1} parent=1 // pred_check_branch
      %20 = sbr.rel (0) target = $region17
    $region16: #{ffn_pallas.1} parent=1 // pred_region
      _
    $region17: #{ffn_pallas.1} parent=1 // pred_fallthru
      _
    // Predicated region
    $region18: #{ffn_pallas.1} parent=1 // pred_check
      _
    $region19: #{ffn_pallas.1} parent=1 // pred_check_branch
      %22 = sbr.rel (0) target = $region21
    $region20: #{ffn_pallas.1} parent=1 // pred_region
      _
    $region21: #{ffn_pallas.1} parent=1 // pred_fallthru
      _
    // Predicated region
    $region22: #{ffn_pallas.1} parent=1 // pred_check
      _
    $region23: #{ffn_pallas.1} parent=1 // pred_check_branch
      %24 = sbr.rel (0) target = $region25
    $region24: #{ffn_pallas.1} parent=1 // pred_region
      _
    $region25: #{ffn_pallas.1} parent=1 // pred_fallthru
      _
    // Predicated region
    $region26: #{ffn_pallas.1} parent=1 // pred_check
      _
    $region27: #{ffn_pallas.1} parent=1 // pred_check_branch
      %26 = sbr.rel (0) target = $region29
    $region28: #{ffn_pallas.1} parent=1 // pred_region
      _
    $region29: #{ffn_pallas.1} parent=1 // pred_fallthru
      _
    %v28 = vld [vmem:[%s1] sm:$0x1]
    %v31 = vunpack.c.l.s4 1983009808
    %v32 = vunpack.c.0.s8 %v31
    %v33 = vlaneseq
    %v34 = vshrl.u32 %v33, 7
    %v35 = vsub.s32 %v32, %v34
    %v36 = vrot.slane %v28, %v35
    %v37 = vrot.slane %v36, 5
    %vm39 = vcmask 257027
    %40 = vst.msk [vmem:[#allocation2] sm:$0x8] %vm39, %v37
    %v41 = vld [vmem:[%s0] sm:$0xf]
    %v42 = vld [vmem:[%s0 + $0x4] sm:$0xf]
    %vm43 = vcmask 257024
    %44 = vst.msk [vmem:[#allocation2 + $0x4] sm:$0xf] %vm43, %v41
    %45 = vst.msk [vmem:[#allocation2 + $0x8] sm:$0xf] %vm43, %v42
    %v46 = vld [vmem:[%s1] sm:$0x2]
    %v49 = vunpack.c.l.s4 1983009808
    %v50 = vunpack.c.0.s8 %v49
    %v51 = vlaneseq
    %v52 = vshrl.u32 %v51, 7
    %v53 = vsub.s32 %v50, %v52
    %v54 = vrot.slane %v46, %v53
    %v55 = vrot.slane %v54, 5
    %v56 = vrot.slane %v55, 4
    %vm58 = vcmask 253952
    %59 = vst.msk [vmem:[#allocation2 + $0xc] sm:$0x1] %vm58, %v56
    %v60 = vld [vmem:[#allocation2] sm:$0x8]
    %v61 = vld [vmem:[#allocation2 + $0x4] sm:$0xf]
    %v62 = vld [vmem:[#allocation2 + $0x8] sm:$0xf]
    %v63 = vld [vmem:[%s3] sm:$0xf]
    %v64 = vld [vmem:[%s3 + $0x4] sm:$0xf]
    %v65 = vld [vmem:[%s3 + $0x8] sm:$0xf]
    %v66 = vld [vmem:[%s3 + $0xc] sm:$0xf]
    %v67 = vld [vmem:[#allocation2 + $0xc] sm:$0x1]
    %s68 = scalar_lea.vmem %s3, 16
    %v69 = vld [vmem:[%s68] sm:$0xf]
    %v70 = vld [vmem:[%s68 + $0x4] sm:$0xf]
    %v71 = vld [vmem:[%s68 + $0x8] sm:$0xf]
    %v72 = vld [vmem:[%s68 + $0xc] sm:$0xf]
    %v77 = vunpack.c.l.b16 %v60
    %v78 = vunpack.c.l.b16 %v61
    %v79 = vunpack.c.l.b16 %v62
    %v80 = vunpack.c.l.b16 %v67
    %v81 = vpack.c.b16 %v78, %v77
    %v82 = vpack.c.b16 %v80, %v79
    %vm83 = vsmask.f32 4352
    %v85 = vshrl.u32 %v81, 16
    %v87 = vrot.slane %v85, 3
    %v88 = vshll.u32 %v81, 16
    %v90 = vrot.slane %v88, 4
    %v91 = vor.u32 %v87, %v90
    %v93 = vshrl.u32 %v82, 16
    %v95 = vrot.slane %v93, 3
    %v96 = vshll.u32 %v82, 16
    %v98 = vrot.slane %v96, 4
    %v99 = vor.u32 %v95, %v98
    %v100 = vsel %vm83, %v91, %v99
    %v105 = vunpack.c.l.b16 %v69
    %v106 = vunpack.c.l.b16 %v70
    %v107 = vunpack.c.l.b16 %v71
    %v108 = vunpack.c.l.b16 %v72
    %v109 = vpack.c.b16 %v106, %v105
    %v110 = vpack.c.b16 %v108, %v107
    %vm113 = vcmask 261120
    %v115 = vsel %vm113, %v100, 0
    %v118 = vsel %vm113, %v99, 0
    %120 = vmatprep.subr.bf16.mxu0 0
    %121 = vmatpush1.bf16.msra.mxu0 %v109
    %122 = vmatprep.subr.bf16.mxu0 0
    %123 = vmatpush1.bf16.msra.mxu0 %v110
    %124 = vmatprep.subr.bf16.mxu0 0
    %125 = vmatpush1.bf16.msra.mxu0 0
    %126 = vmatprep.subr.bf16.mxu0 0
    %127 = vmatpush1.bf16.msra.mxu0 0
    %128 = vmatprep.subr.bf16.mxu0 0
    %129 = vmatpush1.bf16.msra.mxu0 0
    %130 = vmatprep.subr.bf16.mxu0 0
    %131 = vmatpush1.bf16.msra.mxu0 0
    %132 = vmatprep.subr.bf16.mxu0 0
    %133 = vmatpush1.bf16.msra.mxu0 0
    %134 = vmatprep.subr.bf16.mxu0 0
    %135 = vmatpush1.bf16.msra.mxu0 0
    %136 = vmatprep.subr.bf16.mxu0 0
    %137 = vmatpush1.bf16.msra.mxu0 0
    %138 = vmatprep.subr.bf16.mxu0 0
    %139 = vmatpush1.bf16.msra.mxu0 0
    %140 = vmatprep.subr.bf16.mxu0 0
    %141 = vmatpush1.bf16.msra.mxu0 0
    %142 = vmatprep.subr.bf16.mxu0 0
    %143 = vmatpush1.bf16.msra.mxu0 0
    %144 = vmatprep.subr.bf16.mxu0 0
    %145 = vmatpush1.bf16.msra.mxu0 0
    %146 = vmatprep.subr.bf16.mxu0 0
    %147 = vmatpush1.bf16.msra.mxu0 0
    %148 = vmatprep.subr.bf16.mxu0 0
    %149 = vmatpush1.bf16.msra.mxu0 0
    %150 = vmatprep.subr.bf16.mxu0 0
    %151 = vmatpush1.bf16.msra.mxu0 0
    %152 = vmatprep.mubr.bf16.mxu0 0
    %153 = vmatmul.mubr.bf16.gmra.mrb[0].mxu0 %v115
    %v154 = vpop.f32.mrb[0].mxu0
    %v155 = vadd.f32 0.0, %v154
    %v156 = vpop.f32.mrb[0].mxu0
    %v157 = vpop.f32.mrb[0].mxu0
    %v158 = vadd.f32 0.0, %v157
    %v159 = vpop.f32.mrb[0].mxu0
    %160 = vmatprep.mubr.bf16.mxu0 0
    %161 = vmatmul.mubr.bf16.gmra.mrb[0].mxu0 %v118
    %v162 = vpop.f32.mrb[0].mxu0
    %v163 = vadd.f32 0.0, %v162
    %v164 = vpop.f32.mrb[0].mxu0
    %v165 = vpop.f32.mrb[0].mxu0
    %v166 = vpop.f32.mrb[0].mxu0
    %167 = vdwg.mxu0
    %v168 = vpack.c.b16 %v79, %v79
    %vm169 = vcmask 1044480
    %v170 = vrot.slane %v81, 3
    %v171 = vrot.slane %v168, 3
    %v172 = vsel %vm169, %v170, %v171
    %v177 = vunpack.c.l.b16 %v63
    %v178 = vunpack.c.l.b16 %v64
    %v179 = vunpack.c.l.b16 %v65
    %v180 = vunpack.c.l.b16 %v66
    %v181 = vpack.c.b16 %v178, %v177
    %v182 = vpack.c.b16 %v180, %v179
    %v186 = vsel %vm113, %v172, 0
    %v189 = vsel %vm113, %v171, 0
    %191 = vmatprep.subr.bf16.mxu0 0
    %192 = vmatpush1.bf16.msra.mxu0 %v181
    %193 = vmatprep.subr.bf16.mxu0 0
    %194 = vmatpush1.bf16.msra.mxu0 %v182
    %195 = vmatprep.subr.bf16.mxu0 0
    %196 = vmatpush1.bf16.msra.mxu0 0
    %197 = vmatprep.subr.bf16.mxu0 0
    %198 = vmatpush1.bf16.msra.mxu0 0
    %199 = vmatprep.subr.bf16.mxu0 0
    %200 = vmatpush1.bf16.msra.mxu0 0
    %201 = vmatprep.subr.bf16.mxu0 0
    %202 = vmatpush1.bf16.msra.mxu0 0
    %203 = vmatprep.subr.bf16.mxu0 0
    %204 = vmatpush1.bf16.msra.mxu0 0
    %205 = vmatprep.subr.bf16.mxu0 0
    %206 = vmatpush1.bf16.msra.mxu0 0
    %207 = vmatprep.subr.bf16.mxu0 0
    %208 = vmatpush1.bf16.msra.mxu0 0
    %209 = vmatprep.subr.bf16.mxu0 0
    %210 = vmatpush1.bf16.msra.mxu0 0
    %211 = vmatprep.subr.bf16.mxu0 0
    %212 = vmatpush1.bf16.msra.mxu0 0
    %213 = vmatprep.subr.bf16.mxu0 0
    %214 = vmatpush1.bf16.msra.mxu0 0
    %215 = vmatprep.subr.bf16.mxu0 0
    %216 = vmatpush1.bf16.msra.mxu0 0
    %217 = vmatprep.subr.bf16.mxu0 0
    %218 = vmatpush1.bf16.msra.mxu0 0
    %219 = vmatprep.subr.bf16.mxu0 0
    %220 = vmatpush1.bf16.msra.mxu0 0
    %221 = vmatprep.subr.bf16.mxu0 0
    %222 = vmatpush1.bf16.msra.mxu0 0
    %223 = vmatprep.mubr.bf16.mxu0 0
    %224 = vmatmul.mubr.bf16.gmra.mrb[0].mxu0 %v186
    %v225 = vpop.f32.mrb[0].mxu0
    %v226 = vadd.f32 %v155, %v225
    %v227 = vpop.f32.mrb[0].mxu0
    %v228 = vpop.f32.mrb[0].mxu0
    %v229 = vadd.f32 %v158, %v228
    %v230 = vpop.f32.mrb[0].mxu0
    %231 = vmatprep.mubr.bf16.mxu0 0
    %232 = vmatmul.mubr.bf16.gmra.mrb[0].mxu0 %v189
    %v233 = vpop.f32.mrb[0].mxu0
    %v234 = vadd.f32 %v163, %v233
    %v235 = vpop.f32.mrb[0].mxu0
    %v236 = vpop.f32.mrb[0].mxu0
    %v237 = vpop.f32.mrb[0].mxu0
    %238 = vdwg.mxu0
    %s239 = scalar_lea.vmem %s3, 32
    %v240 = vld [vmem:[%s239] sm:$0xf]
    %v241 = vld [vmem:[%s239 + $0x4] sm:$0xf]
    %v242 = vld [vmem:[%s239 + $0x8] sm:$0xf]
    %v243 = vld [vmem:[%s239 + $0xc] sm:$0xf]
    %v244 = vpack.c.b16 %v79, %v78
    %v245 = vpack.c.b16 %v80, %v80
    %v250 = vunpack.c.l.b16 %v240
    %v251 = vunpack.c.l.b16 %v241
    %v252 = vunpack.c.l.b16 %v242
    %v253 = vunpack.c.l.b16 %v243
    %v254 = vpack.c.b16 %v251, %v250
    %v255 = vpack.c.b16 %v253, %v252
    %v259 = vsel %vm113, %v244, 0
    %v262 = vsel %vm113, %v245, 0
    %264 = vmatprep.subr.bf16.mxu0 0
    %265 = vmatpush1.bf16.msra.mxu0 %v254
    %266 = vmatprep.subr.bf16.mxu0 0
    %267 = vmatpush1.bf16.msra.mxu0 %v255
    %268 = vmatprep.subr.bf16.mxu0 0
    %269 = vmatpush1.bf16.msra.mxu0 0
    %270 = vmatprep.subr.bf16.mxu0 0
    %271 = vmatpush1.bf16.msra.mxu0 0
    %272 = vmatprep.subr.bf16.mxu0 0
    %273 = vmatpush1.bf16.msra.mxu0 0
    %274 = vmatprep.subr.bf16.mxu0 0
    %275 = vmatpush1.bf16.msra.mxu0 0
    %276 = vmatprep.subr.bf16.mxu0 0
    %277 = vmatpush1.bf16.msra.mxu0 0
    %278 = vmatprep.subr.bf16.mxu0 0
    %279 = vmatpush1.bf16.msra.mxu0 0
    %280 = vmatprep.subr.bf16.mxu0 0
    %281 = vmatpush1.bf16.msra.mxu0 0
    %282 = vmatprep.subr.bf16.mxu0 0
    %283 = vmatpush1.bf16.msra.mxu0 0
    %284 = vmatprep.subr.bf16.mxu0 0
    %285 = vmatpush1.bf16.msra.mxu0 0
    %286 = vmatprep.subr.bf16.mxu0 0
    %287 = vmatpush1.bf16.msra.mxu0 0
    %288 = vmatprep.subr.bf16.mxu0 0
    %289 = vmatpush1.bf16.msra.mxu0 0
    %290 = vmatprep.subr.bf16.mxu0 0
    %291 = vmatpush1.bf16.msra.mxu0 0
    %292 = vmatprep.subr.bf16.mxu0 0
    %293 = vmatpush1.bf16.msra.mxu0 0
    %294 = vmatprep.subr.bf16.mxu0 0
    %295 = vmatpush1.bf16.msra.mxu0 0
    %296 = vmatprep.mubr.bf16.mxu0 0
    %297 = vmatmul.mubr.bf16.gmra.mrb[0].mxu0 %v259
    %v298 = vpop.f32.mrb[0].mxu0
    %v299 = vadd.f32 0.0, %v298
    %v300 = vpop.f32.mrb[0].mxu0
    %v301 = vpop.f32.mrb[0].mxu0
    %v302 = vadd.f32 0.0, %v301
    %v303 = vpop.f32.mrb[0].mxu0
    %304 = vmatprep.mubr.bf16.mxu0 0
    %305 = vmatmul.mubr.bf16.gmra.mrb[0].mxu0 %v262
    %v306 = vpop.f32.mrb[0].mxu0
    %v307 = vadd.f32 0.0, %v306
    %v308 = vpop.f32.mrb[0].mxu0
    %v309 = vpop.f32.mrb[0].mxu0
    %v310 = vpop.f32.mrb[0].mxu0
    %311 = vdwg.mxu0
    %v312 = vadd.f32 %v226, %v299
    %v313 = vadd.f32 %v229, %v302
    %v314 = vadd.f32 %v234, %v307
    %v315 = vld [vmem:[%s4] sm:$0x1]
    %v317 = vlaneseq
    %v318 = vshrl.u32 %v317, 7
    %v319 = vsub.s32 0, %v318
    %v320 = vrot.slane %v315, %v319
    %v322 = vadd.f32 %v312, %v320
    %v323 = vadd.f32 %v313, %v320
    %v324 = vadd.f32 %v314, %v320
    %v325 = vmul.f32 %v322, -1.702
    %v326 = vmul.f32 %v323, -1.702
    %v327 = vmul.f32 %v324, -1.702
    %v328 = vmul.f32 %v325, 1.442695
    %v329 = vpow.pop %v328
    %v330 = vmul.f32 %v326, 1.442695
    %v331 = vpow.pop %v330
    %v332 = vmul.f32 %v327, 1.442695
    %v333 = vpow.pop %v332
    %v334 = vadd.f32 %v329, 1.0
    %v335 = vadd.f32 %v331, 1.0
    %v336 = vadd.f32 %v333, 1.0
    %v337 = vrcp.pop %v334
    %v338 = vrcp.pop %v335
    %v339 = vrcp.pop %v336
    %v340 = vmul.f32 %v322, %v337
    %v341 = vmul.f32 %v323, %v338
    %v342 = vmul.f32 %v324, %v339
    %v343 = vld [vmem:[%s2] sm:$0xff]
    %v344 = vld [vmem:[%s2 + $0x8] sm:$0xff]
    %v345 = vld [vmem:[%s2 + $0x10] sm:$0x3]
    %347 = vset.pattern.permute.xlu0 0
    %348 = vperm.xlu0 %347, %v343
    %v349 = vpop.permute.xlu0 %348
    %352 = vset.pattern.permute.xlu0 0
    %353 = vperm.xlu0 %352, %v344
    %v354 = vpop.permute.xlu0 %353
    %357 = vset.pattern.permute.xlu0 0
    %358 = vperm.xlu0 %357, %v345
    %v359 = vpop.permute.xlu0 %358
    %v361 = vmul.f32 %v340, %v349
    %v362 = vmul.f32 %v341, %v354
    %v363 = vmul.f32 %v342, %v359
    %v364 = vpack.c.bf16 %v362, %v361
    %v365 = vpack.c.bf16 %v363, %v363
    %v366 = vld [vmem:[%s5] sm:$0xf]
    %v367 = vld [vmem:[%s5 + $0x4] sm:$0xf]
    %v368 = vld [vmem:[%s5 + $0x8] sm:$0xf]
    %v369 = vld [vmem:[%s5 + $0xc] sm:$0xf]
    %v370 = vld [vmem:[%s5 + $0x10] sm:$0xf]
    %v371 = vld [vmem:[%s5 + $0x14] sm:$0xf]
    %v372 = vld [vmem:[%s5 + $0x18] sm:$0xf]
    %v373 = vld [vmem:[%s5 + $0x1c] sm:$0xf]
    %s374 = scalar_lea.vmem %s5, 32
    %v375 = vld [vmem:[%s374] sm:$0xf]
    %v376 = vld [vmem:[%s374 + $0x4] sm:$0xf]
    %v377 = vld [vmem:[%s374 + $0x8] sm:$0xf]
    %v378 = vld [vmem:[%s374 + $0xc] sm:$0xf]
    %v379 = vld [vmem:[%s374 + $0x10] sm:$0xf]
    %v380 = vld [vmem:[%s374 + $0x14] sm:$0xf]
    %v381 = vld [vmem:[%s374 + $0x18] sm:$0xf]
    %v382 = vld [vmem:[%s374 + $0x1c] sm:$0xf]
    %vm383 = vsmask.f32 7424
    %v385 = vshrl.u32 %v364, 16
    %v387 = vshll.u32 %v364, 16
    %v389 = vrot.slane %v387, 1
    %v390 = vor.u32 %v385, %v389
    %v392 = vshll.u32 %v365, 16
    %v394 = vrot.slane %v392, 1
    %v395 = vsel %vm383, %v390, %v394
    %v404 = vunpack.c.l.b16 %v375
    %v405 = vunpack.c.l.b16 %v376
    %v406 = vunpack.c.l.b16 %v377
    %v407 = vunpack.c.l.b16 %v378
    %v408 = vunpack.c.l.b16 %v379
    %v409 = vunpack.c.l.b16 %v380
    %v410 = vunpack.c.l.b16 %v381
    %v411 = vunpack.c.l.b16 %v382
    %v412 = vpack.c.b16 %v405, %v404
    %v413 = vpack.c.b16 %v407, %v406
    %v414 = vpack.c.b16 %v409, %v408
    %v415 = vpack.c.b16 %v411, %v410
    %vm420 = vcmask 523264
    %v422 = vsel %vm420, %v395, 0
    %424 = vmatprep.subr.bf16.mxu0 0
    %425 = vmatpush1.bf16.msra.mxu0 %v412
    %426 = vmatprep.subr.bf16.mxu0 0
    %427 = vmatpush1.bf16.msra.mxu0 %v413
    %428 = vmatprep.subr.bf16.mxu0 0
    %429 = vmatpush1.bf16.msra.mxu0 %v414
    %430 = vmatprep.subr.bf16.mxu0 0
    %431 = vmatpush1.bf16.msra.mxu0 %v415
    %432 = vmatprep.subr.bf16.mxu0 0
    %433 = vmatpush1.bf16.msra.mxu0 0
    %434 = vmatprep.subr.bf16.mxu0 0
    %435 = vmatpush1.bf16.msra.mxu0 0
    %436 = vmatprep.subr.bf16.mxu0 0
    %437 = vmatpush1.bf16.msra.mxu0 0
    %438 = vmatprep.subr.bf16.mxu0 0
    %439 = vmatpush1.bf16.msra.mxu0 0
    %440 = vmatprep.subr.bf16.mxu0 0
    %441 = vmatpush1.bf16.msra.mxu0 0
    %442 = vmatprep.subr.bf16.mxu0 0
    %443 = vmatpush1.bf16.msra.mxu0 0
    %444 = vmatprep.subr.bf16.mxu0 0
    %445 = vmatpush1.bf16.msra.mxu0 0
    %446 = vmatprep.subr.bf16.mxu0 0
    %447 = vmatpush1.bf16.msra.mxu0 0
    %448 = vmatprep.subr.bf16.mxu0 0
    %449 = vmatpush1.bf16.msra.mxu0 0
    %450 = vmatprep.subr.bf16.mxu0 0
    %451 = vmatpush1.bf16.msra.mxu0 0
    %452 = vmatprep.subr.bf16.mxu0 0
    %453 = vmatpush1.bf16.msra.mxu0 0
    %454 = vmatprep.subr.bf16.mxu0 0
    %455 = vmatpush1.bf16.msra.mxu0 0
    %456 = vmatprep.mubr.bf16.mxu0 0
    %457 = vmatmul.mubr.bf16.gmra.mrb[0].mxu0 %v422
    %v458 = vpop.f32.mrb[0].mxu0
    %v459 = vadd.f32 0.0, %v458
    %v460 = vpop.f32.mrb[0].mxu0
    %v461 = vpop.f32.mrb[0].mxu0
    %v462 = vadd.f32 0.0, %v461
    %v463 = vpop.f32.mrb[0].mxu0
    %464 = vdwg.mxu0
    %v473 = vunpack.c.l.b16 %v366
    %v474 = vunpack.c.l.b16 %v367
    %v475 = vunpack.c.l.b16 %v368
    %v476 = vunpack.c.l.b16 %v369
    %v477 = vunpack.c.l.b16 %v370
    %v478 = vunpack.c.l.b16 %v371
    %v479 = vunpack.c.l.b16 %v372
    %v480 = vunpack.c.l.b16 %v373
    %v481 = vpack.c.b16 %v474, %v473
    %v482 = vpack.c.b16 %v476, %v475
    %v483 = vpack.c.b16 %v478, %v477
    %v484 = vpack.c.b16 %v480, %v479
    %v489 = vsel %vm420, %v364, 0
    %491 = vmatprep.subr.bf16.mxu0 0
    %492 = vmatpush1.bf16.msra.mxu0 %v481
    %493 = vmatprep.subr.bf16.mxu0 0
    %494 = vmatpush1.bf16.msra.mxu0 %v482
    %495 = vmatprep.subr.bf16.mxu0 0
    %496 = vmatpush1.bf16.msra.mxu0 %v483
    %497 = vmatprep.subr.bf16.mxu0 0
    %498 = vmatpush1.bf16.msra.mxu0 %v484
    %499 = vmatprep.subr.bf16.mxu0 0
    %500 = vmatpush1.bf16.msra.mxu0 0
    %501 = vmatprep.subr.bf16.mxu0 0
    %502 = vmatpush1.bf16.msra.mxu0 0
    %503 = vmatprep.subr.bf16.mxu0 0
    %504 = vmatpush1.bf16.msra.mxu0 0
    %505 = vmatprep.subr.bf16.mxu0 0
    %506 = vmatpush1.bf16.msra.mxu0 0
    %507 = vmatprep.subr.bf16.mxu0 0
    %508 = vmatpush1.bf16.msra.mxu0 0
    %509 = vmatprep.subr.bf16.mxu0 0
    %510 = vmatpush1.bf16.msra.mxu0 0
    %511 = vmatprep.subr.bf16.mxu0 0
    %512 = vmatpush1.bf16.msra.mxu0 0
    %513 = vmatprep.subr.bf16.mxu0 0
    %514 = vmatpush1.bf16.msra.mxu0 0
    %515 = vmatprep.subr.bf16.mxu0 0
    %516 = vmatpush1.bf16.msra.mxu0 0
    %517 = vmatprep.subr.bf16.mxu0 0
    %518 = vmatpush1.bf16.msra.mxu0 0
    %519 = vmatprep.subr.bf16.mxu0 0
    %520 = vmatpush1.bf16.msra.mxu0 0
    %521 = vmatprep.subr.bf16.mxu0 0
    %522 = vmatpush1.bf16.msra.mxu0 0
    %523 = vmatprep.mubr.bf16.mxu0 0
    %524 = vmatmul.mubr.bf16.gmra.mrb[0].mxu0 %v489
    %v525 = vpop.f32.mrb[0].mxu0
    %v526 = vadd.f32 %v459, %v525
    %v527 = vpop.f32.mrb[0].mxu0
    %v528 = vpop.f32.mrb[0].mxu0
    %v529 = vadd.f32 %v462, %v528
    %v530 = vpop.f32.mrb[0].mxu0
    %531 = vdwg.mxu0
    %s532 = scalar_lea.vmem %s5, 64
    %v533 = vld [vmem:[%s532] sm:$0xf]
    %v534 = vld [vmem:[%s532 + $0x4] sm:$0xf]
    %v535 = vld [vmem:[%s532 + $0x8] sm:$0xf]
    %v536 = vld [vmem:[%s532 + $0xc] sm:$0xf]
    %v537 = vld [vmem:[%s532 + $0x10] sm:$0xf]
    %v538 = vld [vmem:[%s532 + $0x14] sm:$0xf]
    %v539 = vld [vmem:[%s532 + $0x18] sm:$0xf]
    %v540 = vld [vmem:[%s532 + $0x1c] sm:$0xf]
    %vm543 = vcmask 1046528
    %v544 = vrot.slane %v364, 1
    %v545 = vrot.slane %v365, 1
    %v546 = vsel %vm543, %v544, %v545
    %v555 = vunpack.c.l.b16 %v533
    %v556 = vunpack.c.l.b16 %v534
    %v557 = vunpack.c.l.b16 %v535
    %v558 = vunpack.c.l.b16 %v536
    %v559 = vunpack.c.l.b16 %v537
    %v560 = vunpack.c.l.b16 %v538
    %v561 = vunpack.c.l.b16 %v539
    %v562 = vunpack.c.l.b16 %v540
    %v563 = vpack.c.b16 %v556, %v555
    %v564 = vpack.c.b16 %v558, %v557
    %v565 = vpack.c.b16 %v560, %v559
    %v566 = vpack.c.b16 %v562, %v561
    %v572 = vsel %vm420, %v546, 0
    %574 = vmatprep.subr.bf16.mxu0 0
    %575 = vmatpush1.bf16.msra.mxu0 %v563
    %576 = vmatprep.subr.bf16.mxu0 0
    %577 = vmatpush1.bf16.msra.mxu0 %v564
    %578 = vmatprep.subr.bf16.mxu0 0
    %579 = vmatpush1.bf16.msra.mxu0 %v565
    %580 = vmatprep.subr.bf16.mxu0 0
    %581 = vmatpush1.bf16.msra.mxu0 %v566
    %582 = vmatprep.subr.bf16.mxu0 0
    %583 = vmatpush1.bf16.msra.mxu0 0
    %584 = vmatprep.subr.bf16.mxu0 0
    %585 = vmatpush1.bf16.msra.mxu0 0
    %586 = vmatprep.subr.bf16.mxu0 0
    %587 = vmatpush1.bf16.msra.mxu0 0
    %588 = vmatprep.subr.bf16.mxu0 0
    %589 = vmatpush1.bf16.msra.mxu0 0
    %590 = vmatprep.subr.bf16.mxu0 0
    %591 = vmatpush1.bf16.msra.mxu0 0
    %592 = vmatprep.subr.bf16.mxu0 0
    %593 = vmatpush1.bf16.msra.mxu0 0
    %594 = vmatprep.subr.bf16.mxu0 0
    %595 = vmatpush1.bf16.msra.mxu0 0
    %596 = vmatprep.subr.bf16.mxu0 0
    %597 = vmatpush1.bf16.msra.mxu0 0
    %598 = vmatprep.subr.bf16.mxu0 0
    %599 = vmatpush1.bf16.msra.mxu0 0
    %600 = vmatprep.subr.bf16.mxu0 0
    %601 = vmatpush1.bf16.msra.mxu0 0
    %602 = vmatprep.subr.bf16.mxu0 0
    %603 = vmatpush1.bf16.msra.mxu0 0
    %604 = vmatprep.subr.bf16.mxu0 0
    %605 = vmatpush1.bf16.msra.mxu0 0
    %606 = vmatprep.mubr.bf16.mxu0 0
    %607 = vmatmul.mubr.bf16.gmra.mrb[0].mxu0 %v572
    %v608 = vpop.f32.mrb[0].mxu0
    %v609 = vadd.f32 0.0, %v608
    %v610 = vpop.f32.mrb[0].mxu0
    %v611 = vpop.f32.mrb[0].mxu0
    %v612 = vadd.f32 0.0, %v611
    %v613 = vpop.f32.mrb[0].mxu0
    %614 = vdwg.mxu0
    %v615 = vadd.f32 %v526, %v609
    %v616 = vadd.f32 %v529, %v612
    %v617 = vld [vmem:[%s6] sm:$0x1]
    %v619 = vlaneseq
    %v620 = vshrl.u32 %v619, 7
    %v621 = vsub.s32 0, %v620
    %v622 = vrot.slane %v617, %v621
    %v624 = vadd.f32 %v615, %v622
    %v625 = vadd.f32 %v616, %v622
    %vm626 = vcmask 1046528
    %v627 = vrot.slane %v349, 1
    %v628 = vrot.slane %v354, 1
    %v629 = vsel %vm626, %v627, %v628
    %v630 = vrot.slane %v359, 1
    %v631 = vsel %vm626, %v628, %v630
    %v634 = vmul.f32 %v624, %v629
    %v635 = vmul.f32 %v625, %v631
    %vm636 = vcmask 392192
    %637 = vst.msk [vmem:[#allocation3] sm:$0xff] %vm636, %v634
    %638 = vst.msk [vmem:[#allocation3 + $0x8] sm:$0xff] %vm636, %v635
    %s639 = scalar_lea.vmem %s1, 2
    %v640 = vld [vmem:[%s639] sm:$0x1]
    %v643 = vunpack.c.l.s4 1983009808
    %v644 = vunpack.c.0.s8 %v643
    %v645 = vlaneseq
    %v646 = vshrl.u32 %v645, 7
    %v647 = vsub.s32 %v644, %v646
    %v648 = vrot.slane %v640, %v647
    %v649 = vrot.slane %v648, 5
    %s651 = scalar_lea.vmem [#allocation2], 16
    %652 = vst.msk [vmem:[%s651] sm:$0x8] %vm39, %v649
    %s653 = scalar_lea.vmem %s0, 8
    %v654 = vld [vmem:[%s653] sm:$0xf]
    %v655 = vld [vmem:[%s653 + $0x4] sm:$0xf]
    %656 = vst.msk [vmem:[%s651 + $0x4] sm:$0xf] %vm43, %v654
    %657 = vst.msk [vmem:[%s651 + $0x8] sm:$0xf] %vm43, %v655
    %v658 = vld [vmem:[%s639] sm:$0x2]
    %v661 = vunpack.c.l.s4 1983009808
    %v662 = vunpack.c.0.s8 %v661
    %v663 = vlaneseq
    %v664 = vshrl.u32 %v663, 7
    %v665 = vsub.s32 %v662, %v664
    %v666 = vrot.slane %v658, %v665
    %v667 = vrot.slane %v666, 5
    %v668 = vrot.slane %v667, 4
    %670 = vst.msk [vmem:[%s651 + $0xc] sm:$0x1] %vm58, %v668
    %v671 = vld [vmem:[%s651] sm:$0x8]
    %v672 = vld [vmem:[%s651 + $0x4] sm:$0xf]
    %v673 = vld [vmem:[%s651 + $0x8] sm:$0xf]
    %v674 = vld [vmem:[%s3] sm:$0xf]
    %v675 = vld [vmem:[%s3 + $0x4] sm:$0xf]
    %v676 = vld [vmem:[%s3 + $0x8] sm:$0xf]
    %v677 = vld [vmem:[%s3 + $0xc] sm:$0xf]
    %v678 = vld [vmem:[%s651 + $0xc] sm:$0x1]
    %v679 = vld [vmem:[%s68] sm:$0xf]
    %v680 = vld [vmem:[%s68 + $0x4] sm:$0xf]
    %v681 = vld [vmem:[%s68 + $0x8] sm:$0xf]
    %v682 = vld [vmem:[%s68 + $0xc] sm:$0xf]
    %v687 = vunpack.c.l.b16 %v671
    %v688 = vunpack.c.l.b16 %v672
    %v689 = vunpack.c.l.b16 %v673
    %v690 = vunpack.c.l.b16 %v678
    %v691 = vpack.c.b16 %v688, %v687
    %v692 = vpack.c.b16 %v690, %v689
    %v694 = vshrl.u32 %v691, 16
    %v696 = vrot.slane %v694, 3
    %v697 = vshll.u32 %v691, 16
    %v699 = vrot.slane %v697, 4
    %v700 = vor.u32 %v696, %v699
    %v702 = vshrl.u32 %v692, 16
    %v704 = vrot.slane %v702, 3
    %v705 = vshll.u32 %v692, 16
    %v707 = vrot.slane %v705, 4
    %v708 = vor.u32 %v704, %v707
    %v709 = vsel %vm83, %v700, %v708
    %v714 = vunpack.c.l.b16 %v679
    %v715 = vunpack.c.l.b16 %v680
    %v716 = vunpack.c.l.b16 %v681
    %v717 = vunpack.c.l.b16 %v682
    %v718 = vpack.c.b16 %v715, %v714
    %v719 = vpack.c.b16 %v717, %v716
    %v723 = vsel %vm113, %v709, 0
    %v726 = vsel %vm113, %v708, 0
    %728 = vmatprep.subr.bf16.mxu0 0
    %729 = vmatpush1.bf16.msra.mxu0 %v718
    %730 = vmatprep.subr.bf16.mxu0 0
    %731 = vmatpush1.bf16.msra.mxu0 %v719
    %732 = vmatprep.subr.bf16.mxu0 0
    %733 = vmatpush1.bf16.msra.mxu0 0
    %734 = vmatprep.subr.bf16.mxu0 0
    %735 = vmatpush1.bf16.msra.mxu0 0
    %736 = vmatprep.subr.bf16.mxu0 0
    %737 = vmatpush1.bf16.msra.mxu0 0
    %738 = vmatprep.subr.bf16.mxu0 0
    %739 = vmatpush1.bf16.msra.mxu0 0
    %740 = vmatprep.subr.bf16.mxu0 0
    %741 = vmatpush1.bf16.msra.mxu0 0
    %742 = vmatprep.subr.bf16.mxu0 0
    %743 = vmatpush1.bf16.msra.mxu0 0
    %744 = vmatprep.subr.bf16.mxu0 0
    %745 = vmatpush1.bf16.msra.mxu0 0
    %746 = vmatprep.subr.bf16.mxu0 0
    %747 = vmatpush1.bf16.msra.mxu0 0
    %748 = vmatprep.subr.bf16.mxu0 0
    %749 = vmatpush1.bf16.msra.mxu0 0
    %750 = vmatprep.subr.bf16.mxu0 0
    %751 = vmatpush1.bf16.msra.mxu0 0
    %752 = vmatprep.subr.bf16.mxu0 0
    %753 = vmatpush1.bf16.msra.mxu0 0
    %754 = vmatprep.subr.bf16.mxu0 0
    %755 = vmatpush1.bf16.msra.mxu0 0
    %756 = vmatprep.subr.bf16.mxu0 0
    %757 = vmatpush1.bf16.msra.mxu0 0
    %758 = vmatprep.subr.bf16.mxu0 0
    %759 = vmatpush1.bf16.msra.mxu0 0
    %760 = vmatprep.mubr.bf16.mxu0 0
    %761 = vmatmul.mubr.bf16.gmra.mrb[0].mxu0 %v723
    %v762 = vpop.f32.mrb[0].mxu0
    %v763 = vadd.f32 0.0, %v762
    %v764 = vpop.f32.mrb[0].mxu0
    %v765 = vpop.f32.mrb[0].mxu0
    %v766 = vadd.f32 0.0, %v765
    %v767 = vpop.f32.mrb[0].mxu0
    %768 = vmatprep.mubr.bf16.mxu0 0
    %769 = vmatmul.mubr.bf16.gmra.mrb[0].mxu0 %v726
    %v770 = vpop.f32.mrb[0].mxu0
    %v771 = vadd.f32 0.0, %v770
    %v772 = vpop.f32.mrb[0].mxu0
    %v773 = vpop.f32.mrb[0].mxu0
    %v774 = vpop.f32.mrb[0].mxu0
    %775 = vdwg.mxu0
    %v776 = vpack.c.b16 %v689, %v689
    %v777 = vrot.slane %v691, 3
    %v778 = vrot.slane %v776, 3
    %v779 = vsel %vm169, %v777, %v778
    %v784 = vunpack.c.l.b16 %v674
    %v785 = vunpack.c.l.b16 %v675
    %v786 = vunpack.c.l.b16 %v676
    %v787 = vunpack.c.l.b16 %v677
    %v788 = vpack.c.b16 %v785, %v784
    %v789 = vpack.c.b16 %v787, %v786
    %v793 = vsel %vm113, %v779, 0
    %v796 = vsel %vm113, %v778, 0
    %798 = vmatprep.subr.bf16.mxu0 0
    %799 = vmatpush1.bf16.msra.mxu0 %v788
    %800 = vmatprep.subr.bf16.mxu0 0
    %801 = vmatpush1.bf16.msra.mxu0 %v789
    %802 = vmatprep.subr.bf16.mxu0 0
    %803 = vmatpush1.bf16.msra.mxu0 0
    %804 = vmatprep.subr.bf16.mxu0 0
    %805 = vmatpush1.bf16.msra.mxu0 0
    %806 = vmatprep.subr.bf16.mxu0 0
    %807 = vmatpush1.bf16.msra.mxu0 0
    %808 = vmatprep.subr.bf16.mxu0 0
    %809 = vmatpush1.bf16.msra.mxu0 0
    %810 = vmatprep.subr.bf16.mxu0 0
    %811 = vmatpush1.bf16.msra.mxu0 0
    %812 = vmatprep.subr.bf16.mxu0 0
    %813 = vmatpush1.bf16.msra.mxu0 0
    %814 = vmatprep.subr.bf16.mxu0 0
    %815 = vmatpush1.bf16.msra.mxu0 0
    %816 = vmatprep.subr.bf16.mxu0 0
    %817 = vmatpush1.bf16.msra.mxu0 0
    %818 = vmatprep.subr.bf16.mxu0 0
    %819 = vmatpush1.bf16.msra.mxu0 0
    %820 = vmatprep.subr.bf16.mxu0 0
    %821 = vmatpush1.bf16.msra.mxu0 0
    %822 = vmatprep.subr.bf16.mxu0 0
    %823 = vmatpush1.bf16.msra.mxu0 0
    %824 = vmatprep.subr.bf16.mxu0 0
    %825 = vmatpush1.bf16.msra.mxu0 0
    %826 = vmatprep.subr.bf16.mxu0 0
    %827 = vmatpush1.bf16.msra.mxu0 0
    %828 = vmatprep.subr.bf16.mxu0 0
    %829 = vmatpush1.bf16.msra.mxu0 0
    %830 = vmatprep.mubr.bf16.mxu0 0
    %831 = vmatmul.mubr.bf16.gmra.mrb[0].mxu0 %v793
    %v832 = vpop.f32.mrb[0].mxu0
    %v833 = vadd.f32 %v763, %v832
    %v834 = vpop.f32.mrb[0].mxu0
    %v835 = vpop.f32.mrb[0].mxu0
    %v836 = vadd.f32 %v766, %v835
    %v837 = vpop.f32.mrb[0].mxu0
    %838 = vmatprep.mubr.bf16.mxu0 0
    %839 = vmatmul.mubr.bf16.gmra.mrb[0].mxu0 %v796
    %v840 = vpop.f32.mrb[0].mxu0
    %v841 = vadd.f32 %v771, %v840
    %v842 = vpop.f32.mrb[0].mxu0
    %v843 = vpop.f32.mrb[0].mxu0
    %v844 = vpop.f32.mrb[0].mxu0
    %845 = vdwg.mxu0
    %v846 = vld [vmem:[%s239] sm:$0xf]
    %v847 = vld [vmem:[%s239 + $0x4] sm:$0xf]
    %v848 = vld [vmem:[%s239 + $0x8] sm:$0xf]
    %v849 = vld [vmem:[%s239 + $0xc] sm:$0xf]
    %v850 = vpack.c.b16 %v689, %v688
    %v851 = vpack.c.b16 %v690, %v690
    %v856 = vunpack.c.l.b16 %v846
    %v857 = vunpack.c.l.b16 %v847
    %v858 = vunpack.c.l.b16 %v848
    %v859 = vunpack.c.l.b16 %v849
    %v860 = vpack.c.b16 %v857, %v856
    %v861 = vpack.c.b16 %v859, %v858
    %v865 = vsel %vm113, %v850, 0
    %v868 = vsel %vm113, %v851, 0
    %870 = vmatprep.subr.bf16.mxu0 0
    %871 = vmatpush1.bf16.msra.mxu0 %v860
    %872 = vmatprep.subr.bf16.mxu0 0
    %873 = vmatpush1.bf16.msra.mxu0 %v861
    %874 = vmatprep.subr.bf16.mxu0 0
    %875 = vmatpush1.bf16.msra.mxu0 0
    %876 = vmatprep.subr.bf16.mxu0 0
    %877 = vmatpush1.bf16.msra.mxu0 0
    %878 = vmatprep.subr.bf16.mxu0 0
    %879 = vmatpush1.bf16.msra.mxu0 0
    %880 = vmatprep.subr.bf16.mxu0 0
    %881 = vmatpush1.bf16.msra.mxu0 0
    %882 = vmatprep.subr.bf16.mxu0 0
    %883 = vmatpush1.bf16.msra.mxu0 0
    %884 = vmatprep.subr.bf16.mxu0 0
    %885 = vmatpush1.bf16.msra.mxu0 0
    %886 = vmatprep.subr.bf16.mxu0 0
    %887 = vmatpush1.bf16.msra.mxu0 0
    %888 = vmatprep.subr.bf16.mxu0 0
    %889 = vmatpush1.bf16.msra.mxu0 0
    %890 = vmatprep.subr.bf16.mxu0 0
    %891 = vmatpush1.bf16.msra.mxu0 0
    %892 = vmatprep.subr.bf16.mxu0 0
    %893 = vmatpush1.bf16.msra.mxu0 0
    %894 = vmatprep.subr.bf16.mxu0 0
    %895 = vmatpush1.bf16.msra.mxu0 0
    %896 = vmatprep.subr.bf16.mxu0 0
    %897 = vmatpush1.bf16.msra.mxu0 0
    %898 = vmatprep.subr.bf16.mxu0 0
    %899 = vmatpush1.bf16.msra.mxu0 0
    %900 = vmatprep.subr.bf16.mxu0 0
    %901 = vmatpush1.bf16.msra.mxu0 0
    %902 = vmatprep.mubr.bf16.mxu0 0
    %903 = vmatmul.mubr.bf16.gmra.mrb[0].mxu0 %v865
    %v904 = vpop.f32.mrb[0].mxu0
    %v905 = vadd.f32 0.0, %v904
    %v906 = vpop.f32.mrb[0].mxu0
    %v907 = vpop.f32.mrb[0].mxu0
    %v908 = vadd.f32 0.0, %v907
    %v909 = vpop.f32.mrb[0].mxu0
    %910 = vmatprep.mubr.bf16.mxu0 0
    %911 = vmatmul.mubr.bf16.gmra.mrb[0].mxu0 %v868
    %v912 = vpop.f32.mrb[0].mxu0
    %v913 = vadd.f32 0.0, %v912
    %v914 = vpop.f32.mrb[0].mxu0
    %v915 = vpop.f32.mrb[0].mxu0
    %v916 = vpop.f32.mrb[0].mxu0
    %917 = vdwg.mxu0
    %v918 = vadd.f32 %v833, %v905
    %v919 = vadd.f32 %v836, %v908
    %v920 = vadd.f32 %v841, %v913
    %v921 = vld [vmem:[%s4] sm:$0x1]
    %v923 = vlaneseq
    %v924 = vshrl.u32 %v923, 7
    %v925 = vsub.s32 0, %v924
    %v926 = vrot.slane %v921, %v925
    %v928 = vadd.f32 %v918, %v926
    %v929 = vadd.f32 %v919, %v926
    %v930 = vadd.f32 %v920, %v926
    %v931 = vmul.f32 %v928, -1.702
    %v932 = vmul.f32 %v929, -1.702
    %v933 = vmul.f32 %v930, -1.702
    %v934 = vmul.f32 %v931, 1.442695
    %v935 = vpow.pop %v934
    %v936 = vmul.f32 %v932, 1.442695
    %v937 = vpow.pop %v936
    %v938 = vmul.f32 %v933, 1.442695
    %v939 = vpow.pop %v938
    %v940 = vadd.f32 %v935, 1.0
    %v941 = vadd.f32 %v937, 1.0
    %v942 = vadd.f32 %v939, 1.0
    %v943 = vrcp.pop %v940
    %v944 = vrcp.pop %v941
    %v945 = vrcp.pop %v942
    %v946 = vmul.f32 %v928, %v943
    %v947 = vmul.f32 %v929, %v944
    %v948 = vmul.f32 %v930, %v945
    %s949 = scalar_lea.vmem %s2, 24
    %v950 = vld [vmem:[%s949] sm:$0xff]
    %v951 = vld [vmem:[%s949 + $0x8] sm:$0xff]
    %v952 = vld [vmem:[%s949 + $0x10] sm:$0x3]
    %954 = vset.pattern.permute.xlu0 0
    %955 = vperm.xlu0 %954, %v950
    %v956 = vpop.permute.xlu0 %955
    %959 = vset.pattern.permute.xlu0 0
    %960 = vperm.xlu0 %959, %v951
    %v961 = vpop.permute.xlu0 %960
    %964 = vset.pattern.permute.xlu0 0
    %965 = vperm.xlu0 %964, %v952
    %v966 = vpop.permute.xlu0 %965
    %v968 = vmul.f32 %v946, %v956
    %v969 = vmul.f32 %v947, %v961
    %v970 = vmul.f32 %v948, %v966
    %v971 = vpack.c.bf16 %v969, %v968
    %v972 = vpack.c.bf16 %v970, %v970
    %v973 = vld [vmem:[%s5] sm:$0xf]
    %v974 = vld [vmem:[%s5 + $0x4] sm:$0xf]
    %v975 = vld [vmem:[%s5 + $0x8] sm:$0xf]
    %v976 = vld [vmem:[%s5 + $0xc] sm:$0xf]
    %v977 = vld [vmem:[%s5 + $0x10] sm:$0xf]
    %v978 = vld [vmem:[%s5 + $0x14] sm:$0xf]
    %v979 = vld [vmem:[%s5 + $0x18] sm:$0xf]
    %v980 = vld [vmem:[%s5 + $0x1c] sm:$0xf]
    %v981 = vld [vmem:[%s374] sm:$0xf]
    %v982 = vld [vmem:[%s374 + $0x4] sm:$0xf]
    %v983 = vld [vmem:[%s374 + $0x8] sm:$0xf]
    %v984 = vld [vmem:[%s374 + $0xc] sm:$0xf]
    %v985 = vld [vmem:[%s374 + $0x10] sm:$0xf]
    %v986 = vld [vmem:[%s374 + $0x14] sm:$0xf]
    %v987 = vld [vmem:[%s374 + $0x18] sm:$0xf]
    %v988 = vld [vmem:[%s374 + $0x1c] sm:$0xf]
    %v990 = vshrl.u32 %v971, 16
    %v992 = vshll.u32 %v971, 16
    %v994 = vrot.slane %v992, 1
    %v995 = vor.u32 %v990, %v994
    %v997 = vshll.u32 %v972, 16
    %v999 = vrot.slane %v997, 1
    %v1000 = vsel %vm383, %v995, %v999
    %v1009 = vunpack.c.l.b16 %v981
    %v1010 = vunpack.c.l.b16 %v982
    %v1011 = vunpack.c.l.b16 %v983
    %v1012 = vunpack.c.l.b16 %v984
    %v1013 = vunpack.c.l.b16 %v985
    %v1014 = vunpack.c.l.b16 %v986
    %v1015 = vunpack.c.l.b16 %v987
    %v1016 = vunpack.c.l.b16 %v988
    %v1017 = vpack.c.b16 %v1010, %v1009
    %v1018 = vpack.c.b16 %v1012, %v1011
    %v1019 = vpack.c.b16 %v1014, %v1013
    %v1020 = vpack.c.b16 %v1016, %v1015
    %v1026 = vsel %vm420, %v1000, 0
    %1028 = vmatprep.subr.bf16.mxu0 0
    %1029 = vmatpush1.bf16.msra.mxu0 %v1017
    %1030 = vmatprep.subr.bf16.mxu0 0
    %1031 = vmatpush1.bf16.msra.mxu0 %v1018
    %1032 = vmatprep.subr.bf16.mxu0 0
    %1033 = vmatpush1.bf16.msra.mxu0 %v1019
    %1034 = vmatprep.subr.bf16.mxu0 0
    %1035 = vmatpush1.bf16.msra.mxu0 %v1020
    %1036 = vmatprep.subr.bf16.mxu0 0
    %1037 = vmatpush1.bf16.msra.mxu0 0
    %1038 = vmatprep.subr.bf16.mxu0 0
    %1039 = vmatpush1.bf16.msra.mxu0 0
    %1040 = vmatprep.subr.bf16.mxu0 0
    %1041 = vmatpush1.bf16.msra.mxu0 0
    %1042 = vmatprep.subr.bf16.mxu0 0
    %1043 = vmatpush1.bf16.msra.mxu0 0
    %1044 = vmatprep.subr.bf16.mxu0 0
    %1045 = vmatpush1.bf16.msra.mxu0 0
    %1046 = vmatprep.subr.bf16.mxu0 0
    %1047 = vmatpush1.bf16.msra.mxu0 0
    %1048 = vmatprep.subr.bf16.mxu0 0
    %1049 = vmatpush1.bf16.msra.mxu0 0
    %1050 = vmatprep.subr.bf16.mxu0 0
    %1051 = vmatpush1.bf16.msra.mxu0 0
    %1052 = vmatprep.subr.bf16.mxu0 0
    %1053 = vmatpush1.bf16.msra.mxu0 0
    %1054 = vmatprep.subr.bf16.mxu0 0
    %1055 = vmatpush1.bf16.msra.mxu0 0
    %1056 = vmatprep.subr.bf16.mxu0 0
    %1057 = vmatpush1.bf16.msra.mxu0 0
    %1058 = vmatprep.subr.bf16.mxu0 0
    %1059 = vmatpush1.bf16.msra.mxu0 0
    %1060 = vmatprep.mubr.bf16.mxu0 0
    %1061 = vmatmul.mubr.bf16.gmra.mrb[0].mxu0 %v1026
    %v1062 = vpop.f32.mrb[0].mxu0
    %v1063 = vadd.f32 0.0, %v1062
    %v1064 = vpop.f32.mrb[0].mxu0
    %v1065 = vpop.f32.mrb[0].mxu0
    %v1066 = vadd.f32 0.0, %v1065
    %v1067 = vpop.f32.mrb[0].mxu0
    %1068 = vdwg.mxu0
    %v1077 = vunpack.c.l.b16 %v973
    %v1078 = vunpack.c.l.b16 %v974
    %v1079 = vunpack.c.l.b16 %v975
    %v1080 = vunpack.c.l.b16 %v976
    %v1081 = vunpack.c.l.b16 %v977
    %v1082 = vunpack.c.l.b16 %v978
    %v1083 = vunpack.c.l.b16 %v979
    %v1084 = vunpack.c.l.b16 %v980
    %v1085 = vpack.c.b16 %v1078, %v1077
    %v1086 = vpack.c.b16 %v1080, %v1079
    %v1087 = vpack.c.b16 %v1082, %v1081
    %v1088 = vpack.c.b16 %v1084, %v1083
    %v1093 = vsel %vm420, %v971, 0
    %1095 = vmatprep.subr.bf16.mxu0 0
    %1096 = vmatpush1.bf16.msra.mxu0 %v1085
    %1097 = vmatprep.subr.bf16.mxu0 0
    %1098 = vmatpush1.bf16.msra.mxu0 %v1086
    %1099 = vmatprep.subr.bf16.mxu0 0
    %1100 = vmatpush1.bf16.msra.mxu0 %v1087
    %1101 = vmatprep.subr.bf16.mxu0 0
    %1102 = vmatpush1.bf16.msra.mxu0 %v1088
    %1103 = vmatprep.subr.bf16.mxu0 0
    %1104 = vmatpush1.bf16.msra.mxu0 0
    %1105 = vmatprep.subr.bf16.mxu0 0
    %1106 = vmatpush1.bf16.msra.mxu0 0
    %1107 = vmatprep.subr.bf16.mxu0 0
    %1108 = vmatpush1.bf16.msra.mxu0 0
    %1109 = vmatprep.subr.bf16.mxu0 0
    %1110 = vmatpush1.bf16.msra.mxu0 0
    %1111 = vmatprep.subr.bf16.mxu0 0
    %1112 = vmatpush1.bf16.msra.mxu0 0
    %1113 = vmatprep.subr.bf16.mxu0 0
    %1114 = vmatpush1.bf16.msra.mxu0 0
    %1115 = vmatprep.subr.bf16.mxu0 0
    %1116 = vmatpush1.bf16.msra.mxu0 0
    %1117 = vmatprep.subr.bf16.mxu0 0
    %1118 = vmatpush1.bf16.msra.mxu0 0
    %1119 = vmatprep.subr.bf16.mxu0 0
    %1120 = vmatpush1.bf16.msra.mxu0 0
    %1121 = vmatprep.subr.bf16.mxu0 0
    %1122 = vmatpush1.bf16.msra.mxu0 0
    %1123 = vmatprep.subr.bf16.mxu0 0
    %1124 = vmatpush1.bf16.msra.mxu0 0
    %1125 = vmatprep.subr.bf16.mxu0 0
    %1126 = vmatpush1.bf16.msra.mxu0 0
    %1127 = vmatprep.mubr.bf16.mxu0 0
    %1128 = vmatmul.mubr.bf16.gmra.mrb[0].mxu0 %v1093
    %v1129 = vpop.f32.mrb[0].mxu0
    %v1130 = vadd.f32 %v1063, %v1129
    %v1131 = vpop.f32.mrb[0].mxu0
    %v1132 = vpop.f32.mrb[0].mxu0
    %v1133 = vadd.f32 %v1066, %v1132
    %v1134 = vpop.f32.mrb[0].mxu0
    %1135 = vdwg.mxu0
    %v1136 = vld [vmem:[%s532] sm:$0xf]
    %v1137 = vld [vmem:[%s532 + $0x4] sm:$0xf]
    %v1138 = vld [vmem:[%s532 + $0x8] sm:$0xf]
    %v1139 = vld [vmem:[%s532 + $0xc] sm:$0xf]
    %v1140 = vld [vmem:[%s532 + $0x10] sm:$0xf]
    %v1141 = vld [vmem:[%s532 + $0x14] sm:$0xf]
    %v1142 = vld [vmem:[%s532 + $0x18] sm:$0xf]
    %v1143 = vld [vmem:[%s532 + $0x1c] sm:$0xf]
    %v1146 = vrot.slane %v971, 1
    %v1147 = vrot.slane %v972, 1
    %v1148 = vsel %vm543, %v1146, %v1147
    %v1157 = vunpack.c.l.b16 %v1136
    %v1158 = vunpack.c.l.b16 %v1137
    %v1159 = vunpack.c.l.b16 %v1138
    %v1160 = vunpack.c.l.b16 %v1139
    %v1161 = vunpack.c.l.b16 %v1140
    %v1162 = vunpack.c.l.b16 %v1141
    %v1163 = vunpack.c.l.b16 %v1142
    %v1164 = vunpack.c.l.b16 %v1143
    %v1165 = vpack.c.b16 %v1158, %v1157
    %v1166 = vpack.c.b16 %v1160, %v1159
    %v1167 = vpack.c.b16 %v1162, %v1161
    %v1168 = vpack.c.b16 %v1164, %v1163
    %v1174 = vsel %vm420, %v1148, 0
    %1176 = vmatprep.subr.bf16.mxu0 0
    %1177 = vmatpush1.bf16.msra.mxu0 %v1165
    %1178 = vmatprep.subr.bf16.mxu0 0
    %1179 = vmatpush1.bf16.msra.mxu0 %v1166
    %1180 = vmatprep.subr.bf16.mxu0 0
    %1181 = vmatpush1.bf16.msra.mxu0 %v1167
    %1182 = vmatprep.subr.bf16.mxu0 0
    %1183 = vmatpush1.bf16.msra.mxu0 %v1168
    %1184 = vmatprep.subr.bf16.mxu0 0
    %1185 = vmatpush1.bf16.msra.mxu0 0
    %1186 = vmatprep.subr.bf16.mxu0 0
    %1187 = vmatpush1.bf16.msra.mxu0 0
    %1188 = vmatprep.subr.bf16.mxu0 0
    %1189 = vmatpush1.bf16.msra.mxu0 0
    %1190 = vmatprep.subr.bf16.mxu0 0
    %1191 = vmatpush1.bf16.msra.mxu0 0
    %1192 = vmatprep.subr.bf16.mxu0 0
    %1193 = vmatpush1.bf16.msra.mxu0 0
    %1194 = vmatprep.subr.bf16.mxu0 0
    %1195 = vmatpush1.bf16.msra.mxu0 0
    %1196 = vmatprep.subr.bf16.mxu0 0
    %1197 = vmatpush1.bf16.msra.mxu0 0
    %1198 = vmatprep.subr.bf16.mxu0 0
    %1199 = vmatpush1.bf16.msra.mxu0 0
    %1200 = vmatprep.subr.bf16.mxu0 0
    %1201 = vmatpush1.bf16.msra.mxu0 0
    %1202 = vmatprep.subr.bf16.mxu0 0
    %1203 = vmatpush1.bf16.msra.mxu0 0
    %1204 = vmatprep.subr.bf16.mxu0 0
    %1205 = vmatpush1.bf16.msra.mxu0 0
    %1206 = vmatprep.subr.bf16.mxu0 0
    %1207 = vmatpush1.bf16.msra.mxu0 0
    %1208 = vmatprep.mubr.bf16.mxu0 0
    %1209 = vmatmul.mubr.bf16.gmra.mrb[0].mxu0 %v1174
    %v1210 = vpop.f32.mrb[0].mxu0
    %v1211 = vadd.f32 0.0, %v1210
    %v1212 = vpop.f32.mrb[0].mxu0
    %v1213 = vpop.f32.mrb[0].mxu0
    %v1214 = vadd.f32 0.0, %v1213
    %v1215 = vpop.f32.mrb[0].mxu0
    %1216 = vdwg.mxu0
    %v1217 = vadd.f32 %v1130, %v1211
    %v1218 = vadd.f32 %v1133, %v1214
    %v1219 = vld [vmem:[%s6] sm:$0x1]
    %v1221 = vlaneseq
    %v1222 = vshrl.u32 %v1221, 7
    %v1223 = vsub.s32 0, %v1222
    %v1224 = vrot.slane %v1219, %v1223
    %v1226 = vadd.f32 %v1217, %v1224
    %v1227 = vadd.f32 %v1218, %v1224
    %v1228 = vrot.slane %v956, 1
    %v1229 = vrot.slane %v961, 1
    %v1230 = vsel %vm626, %v1228, %v1229
    %v1231 = vrot.slane %v966, 1
    %v1232 = vsel %vm626, %v1229, %v1231
    %v1235 = vmul.f32 %v1226, %v1230
    %v1236 = vmul.f32 %v1227, %v1232
    %s1237 = scalar_lea.vmem [#allocation3], 16
    %1238 = vst.msk [vmem:[%s1237] sm:$0xff] %vm636, %v1235
    %1239 = vst.msk [vmem:[%s1237 + $0x8] sm:$0xff] %vm636, %v1236
    // Predicated region
    $region30: #{ffn_pallas.1} parent=1 // pred_check
      _
    $region31: #{ffn_pallas.1} parent=1 // pred_check_branch
      %1241 = sbr.rel (0) target = $region33
    $region32: #{ffn_pallas.1} parent=1 // pred_region
      %s1243 = ssub.s32 512, 512
      %1244 = vsyncadd [#allocation4], %s1243
      %s1245 = sshll.u32 [#allocation3], 4
      %s1246 = int_to_ptr.vmem [resolvable:$true] %s1245
      %1251 = dma.vmem_to_hbm [thread:$0]  %s1246, 512, %s7, [#allocation4], 128, 128, 8
    $region33: #{ffn_pallas.1} parent=1 // pred_fallthru
      _
    // Predicated region
    $region34: #{ffn_pallas.1} parent=1 // pred_check
      _
    $region35: #{ffn_pallas.1} parent=1 // pred_check_branch
      %1253 = sbr.rel (0) target = $region37
    $region36: #{ffn_pallas.1} parent=1 // pred_region
      %1254 = dma.done [#allocation4], 512
    $region37: #{ffn_pallas.1} parent=1 // pred_fallthru
      _
    %1255 = vsyncpa [#allocation4], 1

</llo_original>
